<compile_context>
chip_gen: v7x
topology: tpu7x:2x2x1
jax: 0.10.0
libtpu: 0.0.40
codegen_flags: <defaults>
</compile_context>

<pallas_src>
import functools

import jax
import jax.numpy as jnp
import numpy as np
from jax.experimental import pallas as pl
from jax.experimental.pallas import tpu as pltpu


def _round_up(x, m):
    return (x + m - 1) // m * m


def _conv2d_kernel(x_ref, w_ref, b_ref, o_ref, *, k, wp, lout):
    # x_ref: (1, Cin, Lpad)    one image, spatially zero-padded then flattened
    # w_ref: (K*K, Cout, Cin)  one 2-D MXU operand per conv tap (resident)
    # b_ref: (Cout, 1)
    # o_ref: (1, Cout, Lout)   Lout = round_up(H*Wp, 128); wrap/pad columns are
    #                          junk and get sliced away in the wrapper.
    cout = o_ref.shape[1]

    # Bias is the accumulator's initial value (fused, no extra VPU pass).
    acc = jnp.broadcast_to(b_ref[...].astype(jnp.float32), (cout, lout))

    # K*K statically-shifted matmuls, accumulated in f32 (implicit GEMM).
    for dh in range(k):
        for dw in range(k):
            off = dh * wp + dw                      # static flat shift
            xs = x_ref[0, :, pl.ds(off, lout)]      # (Cin, Lout)
            wk = w_ref[dh * k + dw]                 # (Cout, Cin)
            acc = acc + jnp.dot(wk, xs, preferred_element_type=jnp.float32)

    o_ref[0] = acc.astype(o_ref.dtype)              # single unmasked lane-dense store


def conv2d(x, weight, bias=None, *, up=False, down=False):
    """Forward of networks.Conv2d (default path: same-padded conv + bias).

    x: (N, Cin, H, W); weight: (Cout, Cin, K, K); bias: (Cout,) or None.
    """
    if up or down:
        # TODO(synk): up/down resampling (resample_filter) path not implemented.
        raise NotImplementedError("up/down resampling path not implemented")

    n, cin, h, w = x.shape
    cout, cin_w, k, k2 = weight.shape
    assert cin_w == cin and k == k2
    assert k % 2 == 1, "only odd kernel sizes (same padding) are supported"

    # Match the module: parameters are applied in the activation dtype.
    weight = weight.astype(x.dtype)
    if bias is not None:
        bias = bias.astype(x.dtype)

    p = k // 2
    hp, wp = h + 2 * p, w + 2 * p
    lout_valid = h * wp                      # flat columns that map to real pixels
    lout = _round_up(lout_valid, 128)        # lane-dense store width
    lpad = lout + (k - 1) * (wp + 1)         # keeps every shifted window in-bounds

    # Spatial zero-pad + flatten (H, W) -> one lane axis, plus tail padding, all
    # at the XLA level so the kernel never reshapes tiled dims.
    x_pad = jnp.pad(x, ((0, 0), (0, 0), (p, p), (p, p)))
    x_flat = jnp.pad(x_pad.reshape(n, cin, hp * wp),
                     ((0, 0), (0, 0), (0, lpad - hp * wp)))

    # Weight taps as (K*K, Cout, Cin): each tap is a clean 2-D matmul operand.
    w_taps = jnp.transpose(weight, (2, 3, 0, 1)).reshape(k * k, cout, cin)

    if bias is None:
        bias = jnp.zeros((cout,), x.dtype)
    b_col = bias.reshape(cout, 1)

    kernel = functools.partial(_conv2d_kernel, k=k, wp=wp, lout=lout)

    # Raise the scoped VMEM limit only when the per-image block needs it
    # (double-buffered in + out, resident weights, f32 accumulator),
    # capped below v7x's 64 MiB physical VMEM.
    elt = x.dtype.itemsize
    est = (2 * (cin * lpad + cout * lout) * elt
           + k * k * cout * cin * elt
           + cout * lout * 4)
    vmem_limit = None
    if est > 16 * 1024 * 1024:
        vmem_limit = int(min(64 * 1024 * 1024, max(2 * est, 32 * 1024 * 1024)))
    compiler_params = pltpu.CompilerParams(
        dimension_semantics=("parallel",),
        vmem_limit_bytes=vmem_limit,
    )

    cost = pl.CostEstimate(
        flops=2 * n * cout * cin * k * k * lout,
        transcendentals=0,
        bytes_accessed=(x_flat.size + w_taps.size + b_col.size) * elt
                       + n * cout * lout * elt,
    )

    out_flat = pl.pallas_call(
        kernel,
        out_shape=jax.ShapeDtypeStruct((n, cout, lout), x.dtype),
        grid=(n,),
        in_specs=[
            pl.BlockSpec((1, cin, lpad), lambda i: (i, 0, 0)),
            pl.BlockSpec((k * k, cout, cin), lambda i: (0, 0, 0)),
            pl.BlockSpec((cout, 1), lambda i: (0, 0)),
        ],
        out_specs=pl.BlockSpec((1, cout, lout), lambda i: (i, 0, 0)),
        compiler_params=compiler_params,
        cost_estimate=cost,
    )(x_flat, w_taps, b_col)

    # Drop lane padding and the width-wrap columns:
    # (N, Cout, Lout) -> (N, Cout, H, Wp) -> (N, Cout, H, W)
    out = out_flat[:, :, :lout_valid].reshape(n, cout, h, wp)[:, :, :, :w]
    return out


def conv2d_ref(x, weight, bias=None):
    """Pure-JAX reference (mirrors torch.nn.functional.conv2d with same pad)."""
    k = weight.shape[-1]
    p = k // 2
    out = jax.lax.conv_general_dilated(
        x.astype(jnp.float32), weight.astype(jnp.float32),
        window_strides=(1, 1), padding=[(p, p), (p, p)],
        dimension_numbers=("NCHW", "OIHW", "NCHW"))
    if bias is not None:
        out = out + bias.reshape(1, -1, 1, 1).astype(jnp.float32)
    return out.astype(x.dtype)


if __name__ == "__main__":
    key = jax.random.PRNGKey(0)
    kx, kw, kb = jax.random.split(key, 3)

    N, Cin, Cout, H, W, K = 2, 4, 8, 16, 16, 3

    x = jax.random.normal(kx, (N, Cin, H, W), dtype=jnp.float32)

    # kaiming_normal init (module default), init_weight=1.
    fan_in = Cin * K * K
    weight = np.sqrt(1.0 / fan_in) * jax.random.normal(
        kw, (Cout, Cin, K, K), dtype=jnp.float32)
    # Module default init_bias=0 would zero the bias; perturb deterministically
    # so the bias-add path is actually exercised.
    bias = 0.1 * jax.random.normal(kb, (Cout,), dtype=jnp.float32)

    out = conv2d(x, weight, bias)
    out = jax.block_until_ready(out)

    ref = conv2d_ref(x, weight, bias)
    np.testing.assert_allclose(np.asarray(out), np.asarray(ref),
                               rtol=1e-4, atol=1e-4)

    print("KERNEL_OK")
</pallas_src>

<mosaic_0001>
module attributes {stable_mosaic.version = 11 : i64} {
  func.func @_conv2d_kernel(%arg0: i32, %arg1: memref<1x4x422xf32, #tpu.memory_space<vmem>>, %arg2: memref<9x8x4xf32, #tpu.memory_space<vmem>>, %arg3: memref<8x1xf32, #tpu.memory_space<vmem>>, %arg4: memref<1x8x384xf32, #tpu.memory_space<vmem>>) attributes {dimension_semantics = [#tpu.dimension_semantics<parallel>], iteration_bounds = array<i64: 2>, scalar_prefetch = 0 : i64, scratch_operands = 0 : i64, tpu.core_type = #tpu.core_type<tc>, window_params = [{transform_indices = @transform_0, window_bounds = array<i64: 1, 4, 422>}, {pipeline_mode = #tpu.pipeline_mode<synchronous>, transform_indices = @transform_1, window_bounds = array<i64: 9, 8, 4>}, {pipeline_mode = #tpu.pipeline_mode<synchronous>, transform_indices = @transform_2, window_bounds = array<i64: 8, 1>}, {transform_indices = @transform_3, window_bounds = array<i64: 1, 8, 384>}]} {
    %c0 = arith.constant 0 : index
    %c0_0 = arith.constant 0 : index
    %0 = vector.load %arg3[%c0, %c0_0] : memref<8x1xf32, #tpu.memory_space<vmem>>, vector<8x1xf32>
    %1 = vector.shape_cast %0 : vector<8x1xf32> to vector<8x1xf32>
    %2 = vector.broadcast %1 : vector<8x1xf32> to vector<8x384xf32>
    %c0_1 = arith.constant 0 : index
    %c0_2 = arith.constant 0 : index
    %c0_3 = arith.constant 0 : index
    %3 = vector.load %arg1[%c0_1, %c0_2, %c0_3] : memref<1x4x422xf32, #tpu.memory_space<vmem>>, vector<1x4x384xf32>
    %4 = vector.shape_cast %3 : vector<1x4x384xf32> to vector<4x384xf32>
    %c0_4 = arith.constant 0 : index
    %c0_5 = arith.constant 0 : index
    %c0_6 = arith.constant 0 : index
    %5 = vector.load %arg2[%c0_4, %c0_5, %c0_6] : memref<9x8x4xf32, #tpu.memory_space<vmem>>, vector<1x8x4xf32>
    %6 = vector.shape_cast %5 : vector<1x8x4xf32> to vector<8x4xf32>
    %cst = arith.constant dense<0.000000e+00> : vector<8x384xf32>
    %7 = tpu.matmul %6, %4, %cst {dimension_numbers = #tpu.dot_dimension_numbers<[1], [0], [0], [1], [0, 0, 1, 1], [], []>} : vector<8x4xf32>, vector<4x384xf32>, vector<8x384xf32> -> vector<8x384xf32>
    %8 = arith.addf %2, %7 : vector<8x384xf32>
    %c0_7 = arith.constant 0 : index
    %c0_8 = arith.constant 0 : index
    %c1 = arith.constant 1 : index
    %9 = vector.load %arg1[%c0_7, %c0_8, %c1] : memref<1x4x422xf32, #tpu.memory_space<vmem>>, vector<1x4x384xf32>
    %10 = vector.shape_cast %9 : vector<1x4x384xf32> to vector<4x384xf32>
    %c1_9 = arith.constant 1 : index
    %c0_10 = arith.constant 0 : index
    %c0_11 = arith.constant 0 : index
    %11 = vector.load %arg2[%c1_9, %c0_10, %c0_11] : memref<9x8x4xf32, #tpu.memory_space<vmem>>, vector<1x8x4xf32>
    %12 = vector.shape_cast %11 : vector<1x8x4xf32> to vector<8x4xf32>
    %cst_12 = arith.constant dense<0.000000e+00> : vector<8x384xf32>
    %13 = tpu.matmul %12, %10, %cst_12 {dimension_numbers = #tpu.dot_dimension_numbers<[1], [0], [0], [1], [0, 0, 1, 1], [], []>} : vector<8x4xf32>, vector<4x384xf32>, vector<8x384xf32> -> vector<8x384xf32>
    %14 = arith.addf %8, %13 : vector<8x384xf32>
    %c0_13 = arith.constant 0 : index
    %c0_14 = arith.constant 0 : index
    %c2 = arith.constant 2 : index
    %15 = vector.load %arg1[%c0_13, %c0_14, %c2] : memref<1x4x422xf32, #tpu.memory_space<vmem>>, vector<1x4x384xf32>
    %16 = vector.shape_cast %15 : vector<1x4x384xf32> to vector<4x384xf32>
    %c2_15 = arith.constant 2 : index
    %c0_16 = arith.constant 0 : index
    %c0_17 = arith.constant 0 : index
    %17 = vector.load %arg2[%c2_15, %c0_16, %c0_17] : memref<9x8x4xf32, #tpu.memory_space<vmem>>, vector<1x8x4xf32>
    %18 = vector.shape_cast %17 : vector<1x8x4xf32> to vector<8x4xf32>
    %cst_18 = arith.constant dense<0.000000e+00> : vector<8x384xf32>
    %19 = tpu.matmul %18, %16, %cst_18 {dimension_numbers = #tpu.dot_dimension_numbers<[1], [0], [0], [1], [0, 0, 1, 1], [], []>} : vector<8x4xf32>, vector<4x384xf32>, vector<8x384xf32> -> vector<8x384xf32>
    %20 = arith.addf %14, %19 : vector<8x384xf32>
    %c0_19 = arith.constant 0 : index
    %c0_20 = arith.constant 0 : index
    %c18 = arith.constant 18 : index
    %21 = vector.load %arg1[%c0_19, %c0_20, %c18] : memref<1x4x422xf32, #tpu.memory_space<vmem>>, vector<1x4x384xf32>
    %22 = vector.shape_cast %21 : vector<1x4x384xf32> to vector<4x384xf32>
    %c3 = arith.constant 3 : index
    %c0_21 = arith.constant 0 : index
    %c0_22 = arith.constant 0 : index
    %23 = vector.load %arg2[%c3, %c0_21, %c0_22] : memref<9x8x4xf32, #tpu.memory_space<vmem>>, vector<1x8x4xf32>
    %24 = vector.shape_cast %23 : vector<1x8x4xf32> to vector<8x4xf32>
    %cst_23 = arith.constant dense<0.000000e+00> : vector<8x384xf32>
    %25 = tpu.matmul %24, %22, %cst_23 {dimension_numbers = #tpu.dot_dimension_numbers<[1], [0], [0], [1], [0, 0, 1, 1], [], []>} : vector<8x4xf32>, vector<4x384xf32>, vector<8x384xf32> -> vector<8x384xf32>
    %26 = arith.addf %20, %25 : vector<8x384xf32>
    %c0_24 = arith.constant 0 : index
    %c0_25 = arith.constant 0 : index
    %c19 = arith.constant 19 : index
    %27 = vector.load %arg1[%c0_24, %c0_25, %c19] : memref<1x4x422xf32, #tpu.memory_space<vmem>>, vector<1x4x384xf32>
    %28 = vector.shape_cast %27 : vector<1x4x384xf32> to vector<4x384xf32>
    %c4 = arith.constant 4 : index
    %c0_26 = arith.constant 0 : index
    %c0_27 = arith.constant 0 : index
    %29 = vector.load %arg2[%c4, %c0_26, %c0_27] : memref<9x8x4xf32, #tpu.memory_space<vmem>>, vector<1x8x4xf32>
    %30 = vector.shape_cast %29 : vector<1x8x4xf32> to vector<8x4xf32>
    %cst_28 = arith.constant dense<0.000000e+00> : vector<8x384xf32>
    %31 = tpu.matmul %30, %28, %cst_28 {dimension_numbers = #tpu.dot_dimension_numbers<[1], [0], [0], [1], [0, 0, 1, 1], [], []>} : vector<8x4xf32>, vector<4x384xf32>, vector<8x384xf32> -> vector<8x384xf32>
    %32 = arith.addf %26, %31 : vector<8x384xf32>
    %c0_29 = arith.constant 0 : index
    %c0_30 = arith.constant 0 : index
    %c20 = arith.constant 20 : index
    %33 = vector.load %arg1[%c0_29, %c0_30, %c20] : memref<1x4x422xf32, #tpu.memory_space<vmem>>, vector<1x4x384xf32>
    %34 = vector.shape_cast %33 : vector<1x4x384xf32> to vector<4x384xf32>
    %c5 = arith.constant 5 : index
    %c0_31 = arith.constant 0 : index
    %c0_32 = arith.constant 0 : index
    %35 = vector.load %arg2[%c5, %c0_31, %c0_32] : memref<9x8x4xf32, #tpu.memory_space<vmem>>, vector<1x8x4xf32>
    %36 = vector.shape_cast %35 : vector<1x8x4xf32> to vector<8x4xf32>
    %cst_33 = arith.constant dense<0.000000e+00> : vector<8x384xf32>
    %37 = tpu.matmul %36, %34, %cst_33 {dimension_numbers = #tpu.dot_dimension_numbers<[1], [0], [0], [1], [0, 0, 1, 1], [], []>} : vector<8x4xf32>, vector<4x384xf32>, vector<8x384xf32> -> vector<8x384xf32>
    %38 = arith.addf %32, %37 : vector<8x384xf32>
    %c0_34 = arith.constant 0 : index
    %c0_35 = arith.constant 0 : index
    %c36 = arith.constant 36 : index
    %39 = vector.load %arg1[%c0_34, %c0_35, %c36] : memref<1x4x422xf32, #tpu.memory_space<vmem>>, vector<1x4x384xf32>
    %40 = vector.shape_cast %39 : vector<1x4x384xf32> to vector<4x384xf32>
    %c6 = arith.constant 6 : index
    %c0_36 = arith.constant 0 : index
    %c0_37 = arith.constant 0 : index
    %41 = vector.load %arg2[%c6, %c0_36, %c0_37] : memref<9x8x4xf32, #tpu.memory_space<vmem>>, vector<1x8x4xf32>
    %42 = vector.shape_cast %41 : vector<1x8x4xf32> to vector<8x4xf32>
    %cst_38 = arith.constant dense<0.000000e+00> : vector<8x384xf32>
    %43 = tpu.matmul %42, %40, %cst_38 {dimension_numbers = #tpu.dot_dimension_numbers<[1], [0], [0], [1], [0, 0, 1, 1], [], []>} : vector<8x4xf32>, vector<4x384xf32>, vector<8x384xf32> -> vector<8x384xf32>
    %44 = arith.addf %38, %43 : vector<8x384xf32>
    %c0_39 = arith.constant 0 : index
    %c0_40 = arith.constant 0 : index
    %c37 = arith.constant 37 : index
    %45 = vector.load %arg1[%c0_39, %c0_40, %c37] : memref<1x4x422xf32, #tpu.memory_space<vmem>>, vector<1x4x384xf32>
    %46 = vector.shape_cast %45 : vector<1x4x384xf32> to vector<4x384xf32>
    %c7 = arith.constant 7 : index
    %c0_41 = arith.constant 0 : index
    %c0_42 = arith.constant 0 : index
    %47 = vector.load %arg2[%c7, %c0_41, %c0_42] : memref<9x8x4xf32, #tpu.memory_space<vmem>>, vector<1x8x4xf32>
    %48 = vector.shape_cast %47 : vector<1x8x4xf32> to vector<8x4xf32>
    %cst_43 = arith.constant dense<0.000000e+00> : vector<8x384xf32>
    %49 = tpu.matmul %48, %46, %cst_43 {dimension_numbers = #tpu.dot_dimension_numbers<[1], [0], [0], [1], [0, 0, 1, 1], [], []>} : vector<8x4xf32>, vector<4x384xf32>, vector<8x384xf32> -> vector<8x384xf32>
    %50 = arith.addf %44, %49 : vector<8x384xf32>
    %c0_44 = arith.constant 0 : index
    %c0_45 = arith.constant 0 : index
    %c38 = arith.constant 38 : index
    %51 = vector.load %arg1[%c0_44, %c0_45, %c38] : memref<1x4x422xf32, #tpu.memory_space<vmem>>, vector<1x4x384xf32>
    %52 = vector.shape_cast %51 : vector<1x4x384xf32> to vector<4x384xf32>
    %c8 = arith.constant 8 : index
    %c0_46 = arith.constant 0 : index
    %c0_47 = arith.constant 0 : index
    %53 = vector.load %arg2[%c8, %c0_46, %c0_47] : memref<9x8x4xf32, #tpu.memory_space<vmem>>, vector<1x8x4xf32>
    %54 = vector.shape_cast %53 : vector<1x8x4xf32> to vector<8x4xf32>
    %cst_48 = arith.constant dense<0.000000e+00> : vector<8x384xf32>
    %55 = tpu.matmul %54, %52, %cst_48 {dimension_numbers = #tpu.dot_dimension_numbers<[1], [0], [0], [1], [0, 0, 1, 1], [], []>} : vector<8x4xf32>, vector<4x384xf32>, vector<8x384xf32> -> vector<8x384xf32>
    %56 = arith.addf %50, %55 : vector<8x384xf32>
    %c0_49 = arith.constant 0 : index
    %c0_50 = arith.constant 0 : index
    %c0_51 = arith.constant 0 : index
    %57 = vector.load %arg4[%c0_49, %c0_50, %c0_51] : memref<1x8x384xf32, #tpu.memory_space<vmem>>, vector<1x8x384xf32>
    %58 = vector.shape_cast %57 : vector<1x8x384xf32> to vector<8x384xf32>
    %59 = vector.shape_cast %56 : vector<8x384xf32> to vector<1x8x384xf32>
    tpu.vector_store %arg4[%c0_49, %c0_50, %c0_51], %59 {strides = array<i32>} : memref<1x8x384xf32, #tpu.memory_space<vmem>>, vector<1x8x384xf32>,
    return
  }
  func.func @transform_0(%arg0: i32) -> (i32, i32, i32) {
    %c0_i32 = arith.constant 0 : i32
    %c0_i32_0 = arith.constant 0 : i32
    %c0_i32_1 = arith.constant 0 : i32
    return %arg0, %c0_i32, %c0_i32_0 : i32, i32, i32
  }
  func.func @transform_1(%arg0: i32) -> (i32, i32, i32) {
    %c0_i32 = arith.constant 0 : i32
    %c0_i32_0 = arith.constant 0 : i32
    %c0_i32_1 = arith.constant 0 : i32
    %c0_i32_2 = arith.constant 0 : i32
    return %c0_i32, %c0_i32_0, %c0_i32_1 : i32, i32, i32
  }
  func.func @transform_2(%arg0: i32) -> (i32, i32) {
    %c0_i32 = arith.constant 0 : i32
    %c0_i32_0 = arith.constant 0 : i32
    %c0_i32_1 = arith.constant 0 : i32
    return %c0_i32, %c0_i32_0 : i32, i32
  }
  func.func @transform_3(%arg0: i32) -> (i32, i32, i32) {
    %c0_i32 = arith.constant 0 : i32
    %c0_i32_0 = arith.constant 0 : i32
    %c0_i32_1 = arith.constant 0 : i32
    return %arg0, %c0_i32, %c0_i32_0 : i32, i32, i32
  }
}

</mosaic_0001>

<llo_original>
// kernel: tpu_custom_call.1
$region0: #{tpu_custom_call.1}
  #allocation0 [shape = 'u32[]', space=smem, size = 0x4, offset = 0x4, fixed_abs, tag = 'smem constant byte address 0x4 - core index']
  #allocation1 [shape = 'u32[144,128]{1,0:T(1,128)}', space=vmem, size = 0x12000, scoped, tag = 'internal scratch']
  %s0 = inlined_call_operand.vmem [shape: f32[2,4,422], index: 0, kind: input, shape index: {}]
  %s1 = inlined_call_operand.vmem [shape: f32[9,8,4], index: 1, kind: input, shape index: {}]
  %s2 = inlined_call_operand.vmem [shape: f32[8,1], index: 2, kind: input, shape index: {}]
  %s3 = inlined_call_operand.hbm [shape: f32[2,8,384], index: 3, kind: output, shape index: {}]
  %s4 = sld [smem:[#allocation0]]
  $region45: #{tpu_custom_call.1} parent=0
    _
  %s6 = ssub.s32 1, %s4
  %s7 = scalar_select 0, %s6, %s4
  $region1: #{tpu_custom_call.1} parent=0
    #allocation2 [shape = 'u8[24576]{0}', space=vmem, size = 0x6000, scoped, tag = 'output window, operand 0']
    #allocation3 [shape = 's32[2]{0}', space=sflag, size = 0x8, scoped, tag = 'scoped memory for tpu_custom_call.1']
    %8 = vsyncpa [#allocation3], 0
    %s9 = scalar_lea.sflag [#allocation3], 1
    %10 = vsyncpa %s9, 0
    loop: start=0, step=1, limit=4
    $region2: #{tpu_custom_call.1} parent=1 // loop_pre_header
      _
    $region3: #{tpu_custom_call.1} parent=1 // loop_header
      %s12 = sphi 0, %s16
      %p13 = scmp.ge.s32.totalorder %s12, 4
      %s22 = sphi 0, %s24
      %s25 = sphi 0, %s22
      %s26 = sphi 0, %s25
      %s42 = sphi 0, %s26
      %s46 = sphi 0, %s46
      %s48 = sphi 0, %s46
      %s49 = sphi 0, %s48
      %s63 = sphi 0, %s49
      %s67 = sphi 0, %s67
      %s69 = sphi 0, %s67
      %s70 = sphi 0, %s69
      %s84 = sphi 0, %s70
      %s90 = sphi 0, %s92
      %s93 = sphi 0, %s90
      %s94 = sphi 0, %s93
      %s110 = sphi 0, %s94
    $region4: #{tpu_custom_call.1} parent=1 // loop_header_branch
      %15 = sbr.rel (%p13) target = $region8
    $region5: #{tpu_custom_call.1} parent=1 // loop_body
      %s17 = ssub.s32 %s12, 1
      %s18 = ssub.s32 %s12, 2
      %s19 = sadd.s32 %s12, 1
      %s20 = ssub.s32 %s12, %s19
      %p21 = scmp.eq.s32.totalorder %s20, 0
      %s23 = sadd.s32 %s22, 1
      %s24 = scalar_select %p21, %s22, %s23
      %p27 = pneg %p21
      %p28 = scmp.eq.s32.totalorder %s12, 1
      %p29 = por %p27, %p28
      %p30 = scmp.ne.s32.totalorder %s22, %s25
      %p31 = scmp.eq.s32.totalorder %s12, 0
      %p32 = por %p30, %p31
      %p33 = scmp.ne.s32.totalorder %s22, %s25
      %p34 = scmp.eq.s32.totalorder %s17, 1
      %p35 = por %p33, %p34
      %p36 = scmp.ne.s32.totalorder %s25, %s26
      %p37 = scmp.eq.s32.totalorder %s17, 0
      %p38 = por %p36, %p37
      %p39 = scmp.ne.s32.totalorder %s25, %s26
      %p40 = scmp.eq.s32.totalorder %s18, 1
      %p41 = por %p39, %p40
      %p43 = scmp.ne.s32.totalorder %s26, %s42
      %p44 = scmp.eq.s32.totalorder %s18, 0
      %p45 = por %p43, %p44
      %s47 = sadd.s32 %s46, 1
      %p50 = scmp.eq.s32.totalorder %s12, 1
      %p51 = scmp.ne.s32.totalorder %s46, %s48
      %p52 = scmp.eq.s32.totalorder %s12, 0
      %p53 = por %p51, %p52
      %p54 = scmp.ne.s32.totalorder %s46, %s48
      %p55 = scmp.eq.s32.totalorder %s17, 1
      %p56 = por %p54, %p55
      %p57 = scmp.ne.s32.totalorder %s48, %s49
      %p58 = scmp.eq.s32.totalorder %s17, 0
      %p59 = por %p57, %p58
      %p60 = scmp.ne.s32.totalorder %s48, %s49
      %p61 = scmp.eq.s32.totalorder %s18, 1
      %p62 = por %p60, %p61
      %p64 = scmp.ne.s32.totalorder %s49, %s63
      %p65 = scmp.eq.s32.totalorder %s18, 0
      %p66 = por %p64, %p65
      %s68 = sadd.s32 %s67, 1
      %p71 = scmp.eq.s32.totalorder %s12, 1
      %p72 = scmp.ne.s32.totalorder %s67, %s69
      %p73 = scmp.eq.s32.totalorder %s12, 0
      %p74 = por %p72, %p73
      %p75 = scmp.ne.s32.totalorder %s67, %s69
      %p76 = scmp.eq.s32.totalorder %s17, 1
      %p77 = por %p75, %p76
      %p78 = scmp.ne.s32.totalorder %s69, %s70
      %p79 = scmp.eq.s32.totalorder %s17, 0
      %p80 = por %p78, %p79
      %p81 = scmp.ne.s32.totalorder %s69, %s70
      %p82 = scmp.eq.s32.totalorder %s18, 1
      %p83 = por %p81, %p82
      %p85 = scmp.ne.s32.totalorder %s70, %s84
      %p86 = scmp.eq.s32.totalorder %s18, 0
      %p87 = por %p85, %p86
      %s88 = ssub.s32 %s12, %s19
      %p89 = scmp.eq.s32.totalorder %s88, 0
      %s91 = sadd.s32 %s90, 1
      %s92 = scalar_select %p89, %s90, %s91
      %p95 = pneg %p89
      %p96 = scmp.eq.s32.totalorder %s12, 1
      %p97 = por %p95, %p96
      %p98 = scmp.ne.s32.totalorder %s90, %s93
      %p99 = scmp.eq.s32.totalorder %s12, 0
      %p100 = por %p98, %p99
      %p101 = scmp.ne.s32.totalorder %s90, %s93
      %p102 = scmp.eq.s32.totalorder %s17, 1
      %p103 = por %p101, %p102
      %p104 = scmp.ne.s32.totalorder %s93, %s94
      %p105 = scmp.eq.s32.totalorder %s17, 0
      %p106 = por %p104, %p105
      %p107 = scmp.ne.s32.totalorder %s93, %s94
      %p108 = scmp.eq.s32.totalorder %s18, 1
      %p109 = por %p107, %p108
      %p111 = scmp.ne.s32.totalorder %s94, %s110
      %p112 = scmp.eq.s32.totalorder %s18, 0
      %p113 = por %p111, %p112
      %p114 = scmp.le.s32.totalorder 1, %s12
      %p115 = scmp.lt.s32.totalorder %s12, 3
      %p116 = pnand %p114, %p115
      %p117 = pneg %p116
      // Predicated region
      $region9: #{tpu_custom_call.1} parent=5 // pred_check
        _
      $region10: #{tpu_custom_call.1} parent=5 // pred_check_branch
        %119 = sbr.rel (%p116) target = $region12
      $region11: #{tpu_custom_call.1} parent=5 // pred_region
        %s120 = ssub.s32 %s12, 1
        // Predicated region
        $region13: #{tpu_custom_call.1} parent=11 // pred_check
          %p121 = pneg %p59
        $region14: #{tpu_custom_call.1} parent=11 // pred_check_branch
          %123 = sbr.rel (%p121) target = $region16
        $region15: #{tpu_custom_call.1} parent=11 // pred_region
          _
        $region16: #{tpu_custom_call.1} parent=11 // pred_fallthru
          _
        // Predicated region
        $region17: #{tpu_custom_call.1} parent=11 // pred_check
          %p124 = pneg %p80
        $region18: #{tpu_custom_call.1} parent=11 // pred_check_branch
          %126 = sbr.rel (%p124) target = $region20
        $region19: #{tpu_custom_call.1} parent=11 // pred_region
          _
        $region20: #{tpu_custom_call.1} parent=11 // pred_fallthru
          _
      $region12: #{tpu_custom_call.1} parent=5 // pred_fallthru
        _
      %p127 = scmp.lt.s32.totalorder %s12, 2
      // Predicated region
      $region21: #{tpu_custom_call.1} parent=5 // pred_check
        %p128 = pneg %p127
      $region22: #{tpu_custom_call.1} parent=5 // pred_check_branch
        %130 = sbr.rel (%p128) target = $region24
      $region23: #{tpu_custom_call.1} parent=5 // pred_region
        // Predicated region
        $region25: #{tpu_custom_call.1} parent=23 // pred_check
          %p131 = pneg %p32
        $region26: #{tpu_custom_call.1} parent=23 // pred_check_branch
          %133 = sbr.rel (%p131) target = $region28
        $region27: #{tpu_custom_call.1} parent=23 // pred_region
          %p134 = scmp.lt.s32.totalorder %s12, 1
          %s135 = scalar_select %p134, %s12, 1
          %s136 = smul.addr %s135, 4
          %s137 = smul.addr %s136, 4
          %s138 = scalar_lea.vmem %s0, %s137
        $region28: #{tpu_custom_call.1} parent=23 // pred_fallthru
          _
      $region24: #{tpu_custom_call.1} parent=5 // pred_fallthru
        _
      %p139 = scmp.le.s32.totalorder 1, %s12
      %p140 = scmp.lt.s32.totalorder %s12, 3
      %p141 = pnand %p139, %p140
      %p142 = pneg %p141
      // Predicated region
      $region29: #{tpu_custom_call.1} parent=5 // pred_check
        _
      $region30: #{tpu_custom_call.1} parent=5 // pred_check_branch
        %144 = sbr.rel (%p141) target = $region32
      $region31: #{tpu_custom_call.1} parent=5 // pred_region
        %s145 = ssub.s32 %s12, 1
        %p146 = scmp.lt.s32.totalorder %s17, 1
        %s147 = scalar_select %p146, %s17, 1
        %s148 = smul.addr %s147, 4
        %s149 = smul.addr %s148, 4
        %s150 = scalar_lea.vmem %s0, %s149
        %p151 = pneg %p38
        %p152 = pneg %p35
        %p153 = pneg %p59
        %p154 = pneg %p56
        %p155 = pneg %p80
        %p156 = pneg %p77
        %p157 = pneg %p106
        %p158 = pneg %p103
        %s159 = sand.u32 %s93, 1
        %s160 = scalar_lea.sflag [#allocation3], %s159
        %s161 = sand.u32 %s93, 1
        %s162 = smul.addr %s161, 24
        %s163 = scalar_lea.vmem [#allocation2], %s162
        %p164 = scmp.lt.s32.totalorder %s17, 1
        %s165 = scalar_select %p164, %s17, 1
        %s166 = smul.addr %s165, 4
        %s167 = smul.addr %s166, 4
        %s168 = scalar_lea.vmem %s0, %s167
        %v169 = vld [vmem:[%s2] sm:$0xff]
        %171 = vset.pattern.permute.xlu0 0
        %172 = vperm.xlu0 %171, %v169
        %v173 = vpop.permute.xlu0 %172
        %v175 = vld [vmem:[%s168] sm:$0xff]
        %v176 = vld [vmem:[%s168 + $0x8] sm:$0xf]
        %v177 = vld [vmem:[%s1] sm:$0xff]
        %v180 = vcombine.high %v175, %v175
        %vm181 = vcmask 31744
        %v183 = vsel %vm181, %v177, 0
        %vm185 = vcmask 1043456
        %v186 = vsel %vm185, %v175, 0
        %v188 = vsel %vm185, %v180, 0
        %v190 = vsel %vm185, %v176, 0
        %192 = vmatprep.subr.mxu0 %v188
        %193 = vmatpush1.msra.mxu0 %v186
        %194 = vmatprep.subr.mxu0 0.0
        %195 = vmatpush1.msra.mxu0 0.0
        %196 = vmatprep.subr.mxu0 0.0
        %197 = vmatpush1.msra.mxu0 0.0
        %198 = vmatprep.subr.mxu0 0.0
        %199 = vmatpush1.msra.mxu0 0.0
        %200 = vmatprep.subr.mxu0 0.0
        %201 = vmatpush1.msra.mxu0 0.0
        %202 = vmatprep.subr.mxu0 0.0
        %203 = vmatpush1.msra.mxu0 0.0
        %204 = vmatprep.subr.mxu0 0.0
        %205 = vmatpush1.msra.mxu0 0.0
        %206 = vmatprep.subr.mxu0 0.0
        %207 = vmatpush1.msra.mxu0 0.0
        %208 = vmatprep.subr.mxu0 0.0
        %209 = vmatpush1.msra.mxu0 0.0
        %210 = vmatprep.subr.mxu0 0.0
        %211 = vmatpush1.msra.mxu0 0.0
        %212 = vmatprep.subr.mxu0 0.0
        %213 = vmatpush1.msra.mxu0 0.0
        %214 = vmatprep.subr.mxu0 0.0
        %215 = vmatpush1.msra.mxu0 0.0
        %216 = vmatprep.subr.mxu0 0.0
        %217 = vmatpush1.msra.mxu0 0.0
        %218 = vmatprep.subr.mxu0 0.0
        %219 = vmatpush1.msra.mxu0 0.0
        %220 = vmatprep.subr.mxu0 0.0
        %221 = vmatpush1.msra.mxu0 0.0
        %222 = vmatprep.subr.mxu0 0.0
        %223 = vmatpush1.msra.mxu0 0.0
        %224 = vmatprep.subr.mxu0 0.0
        %225 = vmatpush1.msra.mxu0 0.0
        %226 = vmatprep.subr.mxu0 0.0
        %227 = vmatpush1.msra.mxu0 0.0
        %228 = vmatprep.subr.mxu0 0.0
        %229 = vmatpush1.msra.mxu0 0.0
        %230 = vmatprep.subr.mxu0 0.0
        %231 = vmatpush1.msra.mxu0 0.0
        %232 = vmatprep.subr.mxu0 0.0
        %233 = vmatpush1.msra.mxu0 0.0
        %234 = vmatprep.subr.mxu0 0.0
        %235 = vmatpush1.msra.mxu0 0.0
        %236 = vmatprep.subr.mxu0 0.0
        %237 = vmatpush1.msra.mxu0 0.0
        %238 = vmatprep.subr.mxu0 0.0
        %239 = vmatpush1.msra.mxu0 0.0
        %240 = vmatprep.subr.mxu0 0.0
        %241 = vmatpush1.msra.mxu0 0.0
        %242 = vmatprep.subr.mxu0 0.0
        %243 = vmatpush1.msra.mxu0 0.0
        %244 = vmatprep.subr.mxu0 0.0
        %245 = vmatpush1.msra.mxu0 0.0
        %246 = vmatprep.subr.mxu0 0.0
        %247 = vmatpush1.msra.mxu0 0.0
        %248 = vmatprep.subr.mxu0 0.0
        %249 = vmatpush1.msra.mxu0 0.0
        %250 = vmatprep.subr.mxu0 0.0
        %251 = vmatpush1.msra.mxu0 0.0
        %252 = vmatprep.subr.mxu0 0.0
        %253 = vmatpush1.msra.mxu0 0.0
        %254 = vmatprep.subr.mxu0 0.0
        %255 = vmatpush1.msra.mxu0 0.0
        %256 = vmatprep.mubr.f32.mxu0 0.0
        %257 = vmatmul.mubr.f32.gmra.mrb[0].mxu0 %v183
        %v258 = vpop.f32.mrb[0].mxu0
        %v259 = vadd.f32 0.0, %v258
        %v260 = vpop.f32.mrb[0].mxu0
        %v261 = vadd.f32 0.0, %v260
        %262 = vdwg.mxu0
        %263 = vmatprep.subr.mxu0 0.0
        %264 = vmatpush1.msra.mxu0 %v190
        %265 = vmatprep.subr.mxu0 0.0
        %266 = vmatpush1.msra.mxu0 0.0
        %267 = vmatprep.subr.mxu0 0.0
        %268 = vmatpush1.msra.mxu0 0.0
        %269 = vmatprep.subr.mxu0 0.0
        %270 = vmatpush1.msra.mxu0 0.0
        %271 = vmatprep.subr.mxu0 0.0
        %272 = vmatpush1.msra.mxu0 0.0
        %273 = vmatprep.subr.mxu0 0.0
        %274 = vmatpush1.msra.mxu0 0.0
        %275 = vmatprep.subr.mxu0 0.0
        %276 = vmatpush1.msra.mxu0 0.0
        %277 = vmatprep.subr.mxu0 0.0
        %278 = vmatpush1.msra.mxu0 0.0
        %279 = vmatprep.subr.mxu0 0.0
        %280 = vmatpush1.msra.mxu0 0.0
        %281 = vmatprep.subr.mxu0 0.0
        %282 = vmatpush1.msra.mxu0 0.0
        %283 = vmatprep.subr.mxu0 0.0
        %284 = vmatpush1.msra.mxu0 0.0
        %285 = vmatprep.subr.mxu0 0.0
        %286 = vmatpush1.msra.mxu0 0.0
        %287 = vmatprep.subr.mxu0 0.0
        %288 = vmatpush1.msra.mxu0 0.0
        %289 = vmatprep.subr.mxu0 0.0
        %290 = vmatpush1.msra.mxu0 0.0
        %291 = vmatprep.subr.mxu0 0.0
        %292 = vmatpush1.msra.mxu0 0.0
        %293 = vmatprep.subr.mxu0 0.0
        %294 = vmatpush1.msra.mxu0 0.0
        %295 = vmatprep.subr.mxu0 0.0
        %296 = vmatpush1.msra.mxu0 0.0
        %297 = vmatprep.subr.mxu0 0.0
        %298 = vmatpush1.msra.mxu0 0.0
        %299 = vmatprep.subr.mxu0 0.0
        %300 = vmatpush1.msra.mxu0 0.0
        %301 = vmatprep.subr.mxu0 0.0
        %302 = vmatpush1.msra.mxu0 0.0
        %303 = vmatprep.subr.mxu0 0.0
        %304 = vmatpush1.msra.mxu0 0.0
        %305 = vmatprep.subr.mxu0 0.0
        %306 = vmatpush1.msra.mxu0 0.0
        %307 = vmatprep.subr.mxu0 0.0
        %308 = vmatpush1.msra.mxu0 0.0
        %309 = vmatprep.subr.mxu0 0.0
        %310 = vmatpush1.msra.mxu0 0.0
        %311 = vmatprep.subr.mxu0 0.0
        %312 = vmatpush1.msra.mxu0 0.0
        %313 = vmatprep.subr.mxu0 0.0
        %314 = vmatpush1.msra.mxu0 0.0
        %315 = vmatprep.subr.mxu0 0.0
        %316 = vmatpush1.msra.mxu0 0.0
        %317 = vmatprep.subr.mxu0 0.0
        %318 = vmatpush1.msra.mxu0 0.0
        %319 = vmatprep.subr.mxu0 0.0
        %320 = vmatpush1.msra.mxu0 0.0
        %321 = vmatprep.subr.mxu0 0.0
        %322 = vmatpush1.msra.mxu0 0.0
        %323 = vmatprep.subr.mxu0 0.0
        %324 = vmatpush1.msra.mxu0 0.0
        %325 = vmatprep.subr.mxu0 0.0
        %326 = vmatpush1.msra.mxu0 0.0
        %327 = vmatprep.mubr.f32.mxu0 0.0
        %328 = vmatmul.mubr.f32.gmra.mrb[0].mxu0 %v183
        %v329 = vpop.f32.mrb[0].mxu0
        %v330 = vadd.f32 0.0, %v329
        %v331 = vpop.f32.mrb[0].mxu0
        %332 = vdwg.mxu0
        %v333 = vadd.f32 %v173, %v259
        %v334 = vadd.f32 %v173, %v261
        %v335 = vadd.f32 %v173, %v330
        %v336 = vld [vmem:[%s168] sm:$0xff]
        %v337 = vld [vmem:[%s168 + $0x8] sm:$0xff]
        %s338 = scalar_lea.vmem %s1, 8
        %v339 = vld [vmem:[%s338] sm:$0xff]
        %v342 = vcombine.high %v336, %v336
        %v343 = vcombine.high %v337, %v337
        %344 = vrot.lane.b32.xlu0 %v336, 127
        %v345 = vpop.permute.xlu0 %344
        %346 = vrot.lane.b32.xlu0 %v342, 127
        %v347 = vpop.permute.xlu0 %346
        %348 = vrot.lane.b32.xlu0 %v337, 127
        %v349 = vpop.permute.xlu0 %348
        %350 = vrot.lane.b32.xlu0 %v343, 127
        %v351 = vpop.permute.xlu0 %350
        %vm352 = vcmask 1039360
        %v353 = vsel %vm352, %v345, %v347
        %v354 = vsel %vm352, %v347, %v349
        %v355 = vsel %vm352, %v349, %v351
        %v357 = vsel %vm181, %v339, 0
        %v359 = vsel %vm185, %v353, 0
        %v361 = vsel %vm185, %v354, 0
        %v363 = vsel %vm185, %v355, 0
        %365 = vmatprep.subr.mxu0 %v361
        %366 = vmatpush1.msra.mxu0 %v359
        %367 = vmatprep.subr.mxu0 0.0
        %368 = vmatpush1.msra.mxu0 0.0
        %369 = vmatprep.subr.mxu0 0.0
        %370 = vmatpush1.msra.mxu0 0.0
        %371 = vmatprep.subr.mxu0 0.0
        %372 = vmatpush1.msra.mxu0 0.0
        %373 = vmatprep.subr.mxu0 0.0
        %374 = vmatpush1.msra.mxu0 0.0
        %375 = vmatprep.subr.mxu0 0.0
        %376 = vmatpush1.msra.mxu0 0.0
        %377 = vmatprep.subr.mxu0 0.0
        %378 = vmatpush1.msra.mxu0 0.0
        %379 = vmatprep.subr.mxu0 0.0
        %380 = vmatpush1.msra.mxu0 0.0
        %381 = vmatprep.subr.mxu0 0.0
        %382 = vmatpush1.msra.mxu0 0.0
        %383 = vmatprep.subr.mxu0 0.0
        %384 = vmatpush1.msra.mxu0 0.0
        %385 = vmatprep.subr.mxu0 0.0
        %386 = vmatpush1.msra.mxu0 0.0
        %387 = vmatprep.subr.mxu0 0.0
        %388 = vmatpush1.msra.mxu0 0.0
        %389 = vmatprep.subr.mxu0 0.0
        %390 = vmatpush1.msra.mxu0 0.0
        %391 = vmatprep.subr.mxu0 0.0
        %392 = vmatpush1.msra.mxu0 0.0
        %393 = vmatprep.subr.mxu0 0.0
        %394 = vmatpush1.msra.mxu0 0.0
        %395 = vmatprep.subr.mxu0 0.0
        %396 = vmatpush1.msra.mxu0 0.0
        %397 = vmatprep.subr.mxu0 0.0
        %398 = vmatpush1.msra.mxu0 0.0
        %399 = vmatprep.subr.mxu0 0.0
        %400 = vmatpush1.msra.mxu0 0.0
        %401 = vmatprep.subr.mxu0 0.0
        %402 = vmatpush1.msra.mxu0 0.0
        %403 = vmatprep.subr.mxu0 0.0
        %404 = vmatpush1.msra.mxu0 0.0
        %405 = vmatprep.subr.mxu0 0.0
        %406 = vmatpush1.msra.mxu0 0.0
        %407 = vmatprep.subr.mxu0 0.0
        %408 = vmatpush1.msra.mxu0 0.0
        %409 = vmatprep.subr.mxu0 0.0
        %410 = vmatpush1.msra.mxu0 0.0
        %411 = vmatprep.subr.mxu0 0.0
        %412 = vmatpush1.msra.mxu0 0.0
        %413 = vmatprep.subr.mxu0 0.0
        %414 = vmatpush1.msra.mxu0 0.0
        %415 = vmatprep.subr.mxu0 0.0
        %416 = vmatpush1.msra.mxu0 0.0
        %417 = vmatprep.subr.mxu0 0.0
        %418 = vmatpush1.msra.mxu0 0.0
        %419 = vmatprep.subr.mxu0 0.0
        %420 = vmatpush1.msra.mxu0 0.0
        %421 = vmatprep.subr.mxu0 0.0
        %422 = vmatpush1.msra.mxu0 0.0
        %423 = vmatprep.subr.mxu0 0.0
        %424 = vmatpush1.msra.mxu0 0.0
        %425 = vmatprep.subr.mxu0 0.0
        %426 = vmatpush1.msra.mxu0 0.0
        %427 = vmatprep.subr.mxu0 0.0
        %428 = vmatpush1.msra.mxu0 0.0
        %429 = vmatprep.mubr.f32.mxu0 0.0
        %430 = vmatmul.mubr.f32.gmra.mrb[0].mxu0 %v357
        %v431 = vpop.f32.mrb[0].mxu0
        %v432 = vadd.f32 0.0, %v431
        %v433 = vpop.f32.mrb[0].mxu0
        %v434 = vadd.f32 0.0, %v433
        %435 = vdwg.mxu0
        %436 = vmatprep.subr.mxu0 0.0
        %437 = vmatpush1.msra.mxu0 %v363
        %438 = vmatprep.subr.mxu0 0.0
        %439 = vmatpush1.msra.mxu0 0.0
        %440 = vmatprep.subr.mxu0 0.0
        %441 = vmatpush1.msra.mxu0 0.0
        %442 = vmatprep.subr.mxu0 0.0
        %443 = vmatpush1.msra.mxu0 0.0
        %444 = vmatprep.subr.mxu0 0.0
        %445 = vmatpush1.msra.mxu0 0.0
        %446 = vmatprep.subr.mxu0 0.0
        %447 = vmatpush1.msra.mxu0 0.0
        %448 = vmatprep.subr.mxu0 0.0
        %449 = vmatpush1.msra.mxu0 0.0
        %450 = vmatprep.subr.mxu0 0.0
        %451 = vmatpush1.msra.mxu0 0.0
        %452 = vmatprep.subr.mxu0 0.0
        %453 = vmatpush1.msra.mxu0 0.0
        %454 = vmatprep.subr.mxu0 0.0
        %455 = vmatpush1.msra.mxu0 0.0
        %456 = vmatprep.subr.mxu0 0.0
        %457 = vmatpush1.msra.mxu0 0.0
        %458 = vmatprep.subr.mxu0 0.0
        %459 = vmatpush1.msra.mxu0 0.0
        %460 = vmatprep.subr.mxu0 0.0
        %461 = vmatpush1.msra.mxu0 0.0
        %462 = vmatprep.subr.mxu0 0.0
        %463 = vmatpush1.msra.mxu0 0.0
        %464 = vmatprep.subr.mxu0 0.0
        %465 = vmatpush1.msra.mxu0 0.0
        %466 = vmatprep.subr.mxu0 0.0
        %467 = vmatpush1.msra.mxu0 0.0
        %468 = vmatprep.subr.mxu0 0.0
        %469 = vmatpush1.msra.mxu0 0.0
        %470 = vmatprep.subr.mxu0 0.0
        %471 = vmatpush1.msra.mxu0 0.0
        %472 = vmatprep.subr.mxu0 0.0
        %473 = vmatpush1.msra.mxu0 0.0
        %474 = vmatprep.subr.mxu0 0.0
        %475 = vmatpush1.msra.mxu0 0.0
        %476 = vmatprep.subr.mxu0 0.0
        %477 = vmatpush1.msra.mxu0 0.0
        %478 = vmatprep.subr.mxu0 0.0
        %479 = vmatpush1.msra.mxu0 0.0
        %480 = vmatprep.subr.mxu0 0.0
        %481 = vmatpush1.msra.mxu0 0.0
        %482 = vmatprep.subr.mxu0 0.0
        %483 = vmatpush1.msra.mxu0 0.0
        %484 = vmatprep.subr.mxu0 0.0
        %485 = vmatpush1.msra.mxu0 0.0
        %486 = vmatprep.subr.mxu0 0.0
        %487 = vmatpush1.msra.mxu0 0.0
        %488 = vmatprep.subr.mxu0 0.0
        %489 = vmatpush1.msra.mxu0 0.0
        %490 = vmatprep.subr.mxu0 0.0
        %491 = vmatpush1.msra.mxu0 0.0
        %492 = vmatprep.subr.mxu0 0.0
        %493 = vmatpush1.msra.mxu0 0.0
        %494 = vmatprep.subr.mxu0 0.0
        %495 = vmatpush1.msra.mxu0 0.0
        %496 = vmatprep.subr.mxu0 0.0
        %497 = vmatpush1.msra.mxu0 0.0
        %498 = vmatprep.subr.mxu0 0.0
        %499 = vmatpush1.msra.mxu0 0.0
        %500 = vmatprep.mubr.f32.mxu0 0.0
        %501 = vmatmul.mubr.f32.gmra.mrb[0].mxu0 %v357
        %v502 = vpop.f32.mrb[0].mxu0
        %v503 = vadd.f32 0.0, %v502
        %v504 = vpop.f32.mrb[0].mxu0
        %505 = vdwg.mxu0
        %v506 = vadd.f32 %v333, %v432
        %v507 = vadd.f32 %v334, %v434
        %v508 = vadd.f32 %v335, %v503
        %v509 = vld [vmem:[%s168] sm:$0xff]
        %v510 = vld [vmem:[%s168 + $0x8] sm:$0xff]
        %s511 = scalar_lea.vmem %s1, 16
        %v512 = vld [vmem:[%s511] sm:$0xff]
        %v515 = vcombine.high %v509, %v509
        %v516 = vcombine.high %v510, %v510
        %517 = vrot.lane.b32.xlu0 %v509, 126
        %v518 = vpop.permute.xlu0 %517
        %519 = vrot.lane.b32.xlu0 %v515, 126
        %v520 = vpop.permute.xlu0 %519
        %521 = vrot.lane.b32.xlu0 %v510, 126
        %v522 = vpop.permute.xlu0 %521
        %523 = vrot.lane.b32.xlu0 %v516, 126
        %v524 = vpop.permute.xlu0 %523
        %vm525 = vcmask 1031168
        %v526 = vsel %vm525, %v518, %v520
        %v527 = vsel %vm525, %v520, %v522
        %v528 = vsel %vm525, %v522, %v524
        %v530 = vsel %vm181, %v512, 0
        %v532 = vsel %vm185, %v526, 0
        %v534 = vsel %vm185, %v527, 0
        %v536 = vsel %vm185, %v528, 0
        %538 = vmatprep.subr.mxu0 %v534
        %539 = vmatpush1.msra.mxu0 %v532
        %540 = vmatprep.subr.mxu0 0.0
        %541 = vmatpush1.msra.mxu0 0.0
        %542 = vmatprep.subr.mxu0 0.0
        %543 = vmatpush1.msra.mxu0 0.0
        %544 = vmatprep.subr.mxu0 0.0
        %545 = vmatpush1.msra.mxu0 0.0
        %546 = vmatprep.subr.mxu0 0.0
        %547 = vmatpush1.msra.mxu0 0.0
        %548 = vmatprep.subr.mxu0 0.0
        %549 = vmatpush1.msra.mxu0 0.0
        %550 = vmatprep.subr.mxu0 0.0
        %551 = vmatpush1.msra.mxu0 0.0
        %552 = vmatprep.subr.mxu0 0.0
        %553 = vmatpush1.msra.mxu0 0.0
        %554 = vmatprep.subr.mxu0 0.0
        %555 = vmatpush1.msra.mxu0 0.0
        %556 = vmatprep.subr.mxu0 0.0
        %557 = vmatpush1.msra.mxu0 0.0
        %558 = vmatprep.subr.mxu0 0.0
        %559 = vmatpush1.msra.mxu0 0.0
        %560 = vmatprep.subr.mxu0 0.0
        %561 = vmatpush1.msra.mxu0 0.0
        %562 = vmatprep.subr.mxu0 0.0
        %563 = vmatpush1.msra.mxu0 0.0
        %564 = vmatprep.subr.mxu0 0.0
        %565 = vmatpush1.msra.mxu0 0.0
        %566 = vmatprep.subr.mxu0 0.0
        %567 = vmatpush1.msra.mxu0 0.0
        %568 = vmatprep.subr.mxu0 0.0
        %569 = vmatpush1.msra.mxu0 0.0
        %570 = vmatprep.subr.mxu0 0.0
        %571 = vmatpush1.msra.mxu0 0.0
        %572 = vmatprep.subr.mxu0 0.0
        %573 = vmatpush1.msra.mxu0 0.0
        %574 = vmatprep.subr.mxu0 0.0
        %575 = vmatpush1.msra.mxu0 0.0
        %576 = vmatprep.subr.mxu0 0.0
        %577 = vmatpush1.msra.mxu0 0.0
        %578 = vmatprep.subr.mxu0 0.0
        %579 = vmatpush1.msra.mxu0 0.0
        %580 = vmatprep.subr.mxu0 0.0
        %581 = vmatpush1.msra.mxu0 0.0
        %582 = vmatprep.subr.mxu0 0.0
        %583 = vmatpush1.msra.mxu0 0.0
        %584 = vmatprep.subr.mxu0 0.0
        %585 = vmatpush1.msra.mxu0 0.0
        %586 = vmatprep.subr.mxu0 0.0
        %587 = vmatpush1.msra.mxu0 0.0
        %588 = vmatprep.subr.mxu0 0.0
        %589 = vmatpush1.msra.mxu0 0.0
        %590 = vmatprep.subr.mxu0 0.0
        %591 = vmatpush1.msra.mxu0 0.0
        %592 = vmatprep.subr.mxu0 0.0
        %593 = vmatpush1.msra.mxu0 0.0
        %594 = vmatprep.subr.mxu0 0.0
        %595 = vmatpush1.msra.mxu0 0.0
        %596 = vmatprep.subr.mxu0 0.0
        %597 = vmatpush1.msra.mxu0 0.0
        %598 = vmatprep.subr.mxu0 0.0
        %599 = vmatpush1.msra.mxu0 0.0
        %600 = vmatprep.subr.mxu0 0.0
        %601 = vmatpush1.msra.mxu0 0.0
        %602 = vmatprep.mubr.f32.mxu0 0.0
        %603 = vmatmul.mubr.f32.gmra.mrb[0].mxu0 %v530
        %v604 = vpop.f32.mrb[0].mxu0
        %v605 = vadd.f32 0.0, %v604
        %v606 = vpop.f32.mrb[0].mxu0
        %v607 = vadd.f32 0.0, %v606
        %608 = vdwg.mxu0
        %609 = vmatprep.subr.mxu0 0.0
        %610 = vmatpush1.msra.mxu0 %v536
        %611 = vmatprep.subr.mxu0 0.0
        %612 = vmatpush1.msra.mxu0 0.0
        %613 = vmatprep.subr.mxu0 0.0
        %614 = vmatpush1.msra.mxu0 0.0
        %615 = vmatprep.subr.mxu0 0.0
        %616 = vmatpush1.msra.mxu0 0.0
        %617 = vmatprep.subr.mxu0 0.0
        %618 = vmatpush1.msra.mxu0 0.0
        %619 = vmatprep.subr.mxu0 0.0
        %620 = vmatpush1.msra.mxu0 0.0
        %621 = vmatprep.subr.mxu0 0.0
        %622 = vmatpush1.msra.mxu0 0.0
        %623 = vmatprep.subr.mxu0 0.0
        %624 = vmatpush1.msra.mxu0 0.0
        %625 = vmatprep.subr.mxu0 0.0
        %626 = vmatpush1.msra.mxu0 0.0
        %627 = vmatprep.subr.mxu0 0.0
        %628 = vmatpush1.msra.mxu0 0.0
        %629 = vmatprep.subr.mxu0 0.0
        %630 = vmatpush1.msra.mxu0 0.0
        %631 = vmatprep.subr.mxu0 0.0
        %632 = vmatpush1.msra.mxu0 0.0
        %633 = vmatprep.subr.mxu0 0.0
        %634 = vmatpush1.msra.mxu0 0.0
        %635 = vmatprep.subr.mxu0 0.0
        %636 = vmatpush1.msra.mxu0 0.0
        %637 = vmatprep.subr.mxu0 0.0
        %638 = vmatpush1.msra.mxu0 0.0
        %639 = vmatprep.subr.mxu0 0.0
        %640 = vmatpush1.msra.mxu0 0.0
        %641 = vmatprep.subr.mxu0 0.0
        %642 = vmatpush1.msra.mxu0 0.0
        %643 = vmatprep.subr.mxu0 0.0
        %644 = vmatpush1.msra.mxu0 0.0
        %645 = vmatprep.subr.mxu0 0.0
        %646 = vmatpush1.msra.mxu0 0.0
        %647 = vmatprep.subr.mxu0 0.0
        %648 = vmatpush1.msra.mxu0 0.0
        %649 = vmatprep.subr.mxu0 0.0
        %650 = vmatpush1.msra.mxu0 0.0
        %651 = vmatprep.subr.mxu0 0.0
        %652 = vmatpush1.msra.mxu0 0.0
        %653 = vmatprep.subr.mxu0 0.0
        %654 = vmatpush1.msra.mxu0 0.0
        %655 = vmatprep.subr.mxu0 0.0
        %656 = vmatpush1.msra.mxu0 0.0
        %657 = vmatprep.subr.mxu0 0.0
        %658 = vmatpush1.msra.mxu0 0.0
        %659 = vmatprep.subr.mxu0 0.0
        %660 = vmatpush1.msra.mxu0 0.0
        %661 = vmatprep.subr.mxu0 0.0
        %662 = vmatpush1.msra.mxu0 0.0
        %663 = vmatprep.subr.mxu0 0.0
        %664 = vmatpush1.msra.mxu0 0.0
        %665 = vmatprep.subr.mxu0 0.0
        %666 = vmatpush1.msra.mxu0 0.0
        %667 = vmatprep.subr.mxu0 0.0
        %668 = vmatpush1.msra.mxu0 0.0
        %669 = vmatprep.subr.mxu0 0.0
        %670 = vmatpush1.msra.mxu0 0.0
        %671 = vmatprep.subr.mxu0 0.0
        %672 = vmatpush1.msra.mxu0 0.0
        %673 = vmatprep.mubr.f32.mxu0 0.0
        %674 = vmatmul.mubr.f32.gmra.mrb[0].mxu0 %v530
        %v675 = vpop.f32.mrb[0].mxu0
        %v676 = vadd.f32 0.0, %v675
        %v677 = vpop.f32.mrb[0].mxu0
        %678 = vdwg.mxu0
        %v679 = vadd.f32 %v506, %v605
        %v680 = vadd.f32 %v507, %v607
        %v681 = vadd.f32 %v508, %v676
        %v682 = vld [vmem:[%s168] sm:$0xff]
        %v683 = vld [vmem:[%s168 + $0x8] sm:$0xff]
        %s684 = scalar_lea.vmem %s1, 24
        %v685 = vld [vmem:[%s684] sm:$0xff]
        %v688 = vcombine.high %v682, %v682
        %v689 = vcombine.high %v683, %v683
        %690 = vrot.lane.b32.xlu0 %v682, 110
        %v691 = vpop.permute.xlu0 %690
        %692 = vrot.lane.b32.xlu0 %v688, 110
        %v693 = vpop.permute.xlu0 %692
        %694 = vrot.lane.b32.xlu0 %v683, 110
        %v695 = vpop.permute.xlu0 %694
        %696 = vrot.lane.b32.xlu0 %v689, 110
        %v697 = vpop.permute.xlu0 %696
        %vm698 = vcmask 900096
        %v699 = vsel %vm698, %v691, %v693
        %v700 = vsel %vm698, %v693, %v695
        %v701 = vsel %vm698, %v695, %v697
        %v703 = vsel %vm181, %v685, 0
        %v705 = vsel %vm185, %v699, 0
        %v707 = vsel %vm185, %v700, 0
        %v709 = vsel %vm185, %v701, 0
        %711 = vmatprep.subr.mxu0 %v707
        %712 = vmatpush1.msra.mxu0 %v705
        %713 = vmatprep.subr.mxu0 0.0
        %714 = vmatpush1.msra.mxu0 0.0
        %715 = vmatprep.subr.mxu0 0.0
        %716 = vmatpush1.msra.mxu0 0.0
        %717 = vmatprep.subr.mxu0 0.0
        %718 = vmatpush1.msra.mxu0 0.0
        %719 = vmatprep.subr.mxu0 0.0
        %720 = vmatpush1.msra.mxu0 0.0
        %721 = vmatprep.subr.mxu0 0.0
        %722 = vmatpush1.msra.mxu0 0.0
        %723 = vmatprep.subr.mxu0 0.0
        %724 = vmatpush1.msra.mxu0 0.0
        %725 = vmatprep.subr.mxu0 0.0
        %726 = vmatpush1.msra.mxu0 0.0
        %727 = vmatprep.subr.mxu0 0.0
        %728 = vmatpush1.msra.mxu0 0.0
        %729 = vmatprep.subr.mxu0 0.0
        %730 = vmatpush1.msra.mxu0 0.0
        %731 = vmatprep.subr.mxu0 0.0
        %732 = vmatpush1.msra.mxu0 0.0
        %733 = vmatprep.subr.mxu0 0.0
        %734 = vmatpush1.msra.mxu0 0.0
        %735 = vmatprep.subr.mxu0 0.0
        %736 = vmatpush1.msra.mxu0 0.0
        %737 = vmatprep.subr.mxu0 0.0
        %738 = vmatpush1.msra.mxu0 0.0
        %739 = vmatprep.subr.mxu0 0.0
        %740 = vmatpush1.msra.mxu0 0.0
        %741 = vmatprep.subr.mxu0 0.0
        %742 = vmatpush1.msra.mxu0 0.0
        %743 = vmatprep.subr.mxu0 0.0
        %744 = vmatpush1.msra.mxu0 0.0
        %745 = vmatprep.subr.mxu0 0.0
        %746 = vmatpush1.msra.mxu0 0.0
        %747 = vmatprep.subr.mxu0 0.0
        %748 = vmatpush1.msra.mxu0 0.0
        %749 = vmatprep.subr.mxu0 0.0
        %750 = vmatpush1.msra.mxu0 0.0
        %751 = vmatprep.subr.mxu0 0.0
        %752 = vmatpush1.msra.mxu0 0.0
        %753 = vmatprep.subr.mxu0 0.0
        %754 = vmatpush1.msra.mxu0 0.0
        %755 = vmatprep.subr.mxu0 0.0
        %756 = vmatpush1.msra.mxu0 0.0
        %757 = vmatprep.subr.mxu0 0.0
        %758 = vmatpush1.msra.mxu0 0.0
        %759 = vmatprep.subr.mxu0 0.0
        %760 = vmatpush1.msra.mxu0 0.0
        %761 = vmatprep.subr.mxu0 0.0
        %762 = vmatpush1.msra.mxu0 0.0
        %763 = vmatprep.subr.mxu0 0.0
        %764 = vmatpush1.msra.mxu0 0.0
        %765 = vmatprep.subr.mxu0 0.0
        %766 = vmatpush1.msra.mxu0 0.0
        %767 = vmatprep.subr.mxu0 0.0
        %768 = vmatpush1.msra.mxu0 0.0
        %769 = vmatprep.subr.mxu0 0.0
        %770 = vmatpush1.msra.mxu0 0.0
        %771 = vmatprep.subr.mxu0 0.0
        %772 = vmatpush1.msra.mxu0 0.0
        %773 = vmatprep.subr.mxu0 0.0
        %774 = vmatpush1.msra.mxu0 0.0
        %775 = vmatprep.mubr.f32.mxu0 0.0
        %776 = vmatmul.mubr.f32.gmra.mrb[0].mxu0 %v703
        %v777 = vpop.f32.mrb[0].mxu0
        %v778 = vadd.f32 0.0, %v777
        %v779 = vpop.f32.mrb[0].mxu0
        %v780 = vadd.f32 0.0, %v779
        %781 = vdwg.mxu0
        %782 = vmatprep.subr.mxu0 0.0
        %783 = vmatpush1.msra.mxu0 %v709
        %784 = vmatprep.subr.mxu0 0.0
        %785 = vmatpush1.msra.mxu0 0.0
        %786 = vmatprep.subr.mxu0 0.0
        %787 = vmatpush1.msra.mxu0 0.0
        %788 = vmatprep.subr.mxu0 0.0
        %789 = vmatpush1.msra.mxu0 0.0
        %790 = vmatprep.subr.mxu0 0.0
        %791 = vmatpush1.msra.mxu0 0.0
        %792 = vmatprep.subr.mxu0 0.0
        %793 = vmatpush1.msra.mxu0 0.0
        %794 = vmatprep.subr.mxu0 0.0
        %795 = vmatpush1.msra.mxu0 0.0
        %796 = vmatprep.subr.mxu0 0.0
        %797 = vmatpush1.msra.mxu0 0.0
        %798 = vmatprep.subr.mxu0 0.0
        %799 = vmatpush1.msra.mxu0 0.0
        %800 = vmatprep.subr.mxu0 0.0
        %801 = vmatpush1.msra.mxu0 0.0
        %802 = vmatprep.subr.mxu0 0.0
        %803 = vmatpush1.msra.mxu0 0.0
        %804 = vmatprep.subr.mxu0 0.0
        %805 = vmatpush1.msra.mxu0 0.0
        %806 = vmatprep.subr.mxu0 0.0
        %807 = vmatpush1.msra.mxu0 0.0
        %808 = vmatprep.subr.mxu0 0.0
        %809 = vmatpush1.msra.mxu0 0.0
        %810 = vmatprep.subr.mxu0 0.0
        %811 = vmatpush1.msra.mxu0 0.0
        %812 = vmatprep.subr.mxu0 0.0
        %813 = vmatpush1.msra.mxu0 0.0
        %814 = vmatprep.subr.mxu0 0.0
        %815 = vmatpush1.msra.mxu0 0.0
        %816 = vmatprep.subr.mxu0 0.0
        %817 = vmatpush1.msra.mxu0 0.0
        %818 = vmatprep.subr.mxu0 0.0
        %819 = vmatpush1.msra.mxu0 0.0
        %820 = vmatprep.subr.mxu0 0.0
        %821 = vmatpush1.msra.mxu0 0.0
        %822 = vmatprep.subr.mxu0 0.0
        %823 = vmatpush1.msra.mxu0 0.0
        %824 = vmatprep.subr.mxu0 0.0
        %825 = vmatpush1.msra.mxu0 0.0
        %826 = vmatprep.subr.mxu0 0.0
        %827 = vmatpush1.msra.mxu0 0.0
        %828 = vmatprep.subr.mxu0 0.0
        %829 = vmatpush1.msra.mxu0 0.0
        %830 = vmatprep.subr.mxu0 0.0
        %831 = vmatpush1.msra.mxu0 0.0
        %832 = vmatprep.subr.mxu0 0.0
        %833 = vmatpush1.msra.mxu0 0.0
        %834 = vmatprep.subr.mxu0 0.0
        %835 = vmatpush1.msra.mxu0 0.0
        %836 = vmatprep.subr.mxu0 0.0
        %837 = vmatpush1.msra.mxu0 0.0
        %838 = vmatprep.subr.mxu0 0.0
        %839 = vmatpush1.msra.mxu0 0.0
        %840 = vmatprep.subr.mxu0 0.0
        %841 = vmatpush1.msra.mxu0 0.0
        %842 = vmatprep.subr.mxu0 0.0
        %843 = vmatpush1.msra.mxu0 0.0
        %844 = vmatprep.subr.mxu0 0.0
        %845 = vmatpush1.msra.mxu0 0.0
        %846 = vmatprep.mubr.f32.mxu0 0.0
        %847 = vmatmul.mubr.f32.gmra.mrb[0].mxu0 %v703
        %v848 = vpop.f32.mrb[0].mxu0
        %v849 = vadd.f32 0.0, %v848
        %v850 = vpop.f32.mrb[0].mxu0
        %851 = vdwg.mxu0
        %v852 = vadd.f32 %v679, %v778
        %v853 = vadd.f32 %v680, %v780
        %v854 = vadd.f32 %v681, %v849
        %v855 = vld [vmem:[%s168] sm:$0xff]
        %v856 = vld [vmem:[%s168 + $0x8] sm:$0xff]
        %s857 = scalar_lea.vmem %s1, 32
        %v858 = vld [vmem:[%s857] sm:$0xff]
        %v861 = vcombine.high %v855, %v855
        %v862 = vcombine.high %v856, %v856
        %863 = vrot.lane.b32.xlu0 %v855, 109
        %v864 = vpop.permute.xlu0 %863
        %865 = vrot.lane.b32.xlu0 %v861, 109
        %v866 = vpop.permute.xlu0 %865
        %867 = vrot.lane.b32.xlu0 %v856, 109
        %v868 = vpop.permute.xlu0 %867
        %869 = vrot.lane.b32.xlu0 %v862, 109
        %v870 = vpop.permute.xlu0 %869
        %vm871 = vcmask 891904
        %v872 = vsel %vm871, %v864, %v866
        %v873 = vsel %vm871, %v866, %v868
        %v874 = vsel %vm871, %v868, %v870
        %v876 = vsel %vm181, %v858, 0
        %v878 = vsel %vm185, %v872, 0
        %v880 = vsel %vm185, %v873, 0
        %v882 = vsel %vm185, %v874, 0
        %884 = vmatprep.subr.mxu0 %v880
        %885 = vmatpush1.msra.mxu0 %v878
        %886 = vmatprep.subr.mxu0 0.0
        %887 = vmatpush1.msra.mxu0 0.0
        %888 = vmatprep.subr.mxu0 0.0
        %889 = vmatpush1.msra.mxu0 0.0
        %890 = vmatprep.subr.mxu0 0.0
        %891 = vmatpush1.msra.mxu0 0.0
        %892 = vmatprep.subr.mxu0 0.0
        %893 = vmatpush1.msra.mxu0 0.0
        %894 = vmatprep.subr.mxu0 0.0
        %895 = vmatpush1.msra.mxu0 0.0
        %896 = vmatprep.subr.mxu0 0.0
        %897 = vmatpush1.msra.mxu0 0.0
        %898 = vmatprep.subr.mxu0 0.0
        %899 = vmatpush1.msra.mxu0 0.0
        %900 = vmatprep.subr.mxu0 0.0
        %901 = vmatpush1.msra.mxu0 0.0
        %902 = vmatprep.subr.mxu0 0.0
        %903 = vmatpush1.msra.mxu0 0.0
        %904 = vmatprep.subr.mxu0 0.0
        %905 = vmatpush1.msra.mxu0 0.0
        %906 = vmatprep.subr.mxu0 0.0
        %907 = vmatpush1.msra.mxu0 0.0
        %908 = vmatprep.subr.mxu0 0.0
        %909 = vmatpush1.msra.mxu0 0.0
        %910 = vmatprep.subr.mxu0 0.0
        %911 = vmatpush1.msra.mxu0 0.0
        %912 = vmatprep.subr.mxu0 0.0
        %913 = vmatpush1.msra.mxu0 0.0
        %914 = vmatprep.subr.mxu0 0.0
        %915 = vmatpush1.msra.mxu0 0.0
        %916 = vmatprep.subr.mxu0 0.0
        %917 = vmatpush1.msra.mxu0 0.0
        %918 = vmatprep.subr.mxu0 0.0
        %919 = vmatpush1.msra.mxu0 0.0
        %920 = vmatprep.subr.mxu0 0.0
        %921 = vmatpush1.msra.mxu0 0.0
        %922 = vmatprep.subr.mxu0 0.0
        %923 = vmatpush1.msra.mxu0 0.0
        %924 = vmatprep.subr.mxu0 0.0
        %925 = vmatpush1.msra.mxu0 0.0
        %926 = vmatprep.subr.mxu0 0.0
        %927 = vmatpush1.msra.mxu0 0.0
        %928 = vmatprep.subr.mxu0 0.0
        %929 = vmatpush1.msra.mxu0 0.0
        %930 = vmatprep.subr.mxu0 0.0
        %931 = vmatpush1.msra.mxu0 0.0
        %932 = vmatprep.subr.mxu0 0.0
        %933 = vmatpush1.msra.mxu0 0.0
        %934 = vmatprep.subr.mxu0 0.0
        %935 = vmatpush1.msra.mxu0 0.0
        %936 = vmatprep.subr.mxu0 0.0
        %937 = vmatpush1.msra.mxu0 0.0
        %938 = vmatprep.subr.mxu0 0.0
        %939 = vmatpush1.msra.mxu0 0.0
        %940 = vmatprep.subr.mxu0 0.0
        %941 = vmatpush1.msra.mxu0 0.0
        %942 = vmatprep.subr.mxu0 0.0
        %943 = vmatpush1.msra.mxu0 0.0
        %944 = vmatprep.subr.mxu0 0.0
        %945 = vmatpush1.msra.mxu0 0.0
        %946 = vmatprep.subr.mxu0 0.0
        %947 = vmatpush1.msra.mxu0 0.0
        %948 = vmatprep.mubr.f32.mxu0 0.0
        %949 = vmatmul.mubr.f32.gmra.mrb[0].mxu0 %v876
        %v950 = vpop.f32.mrb[0].mxu0
        %v951 = vadd.f32 0.0, %v950
        %v952 = vpop.f32.mrb[0].mxu0
        %v953 = vadd.f32 0.0, %v952
        %954 = vdwg.mxu0
        %955 = vmatprep.subr.mxu0 0.0
        %956 = vmatpush1.msra.mxu0 %v882
        %957 = vmatprep.subr.mxu0 0.0
        %958 = vmatpush1.msra.mxu0 0.0
        %959 = vmatprep.subr.mxu0 0.0
        %960 = vmatpush1.msra.mxu0 0.0
        %961 = vmatprep.subr.mxu0 0.0
        %962 = vmatpush1.msra.mxu0 0.0
        %963 = vmatprep.subr.mxu0 0.0
        %964 = vmatpush1.msra.mxu0 0.0
        %965 = vmatprep.subr.mxu0 0.0
        %966 = vmatpush1.msra.mxu0 0.0
        %967 = vmatprep.subr.mxu0 0.0
        %968 = vmatpush1.msra.mxu0 0.0
        %969 = vmatprep.subr.mxu0 0.0
        %970 = vmatpush1.msra.mxu0 0.0
        %971 = vmatprep.subr.mxu0 0.0
        %972 = vmatpush1.msra.mxu0 0.0
        %973 = vmatprep.subr.mxu0 0.0
        %974 = vmatpush1.msra.mxu0 0.0
        %975 = vmatprep.subr.mxu0 0.0
        %976 = vmatpush1.msra.mxu0 0.0
        %977 = vmatprep.subr.mxu0 0.0
        %978 = vmatpush1.msra.mxu0 0.0
        %979 = vmatprep.subr.mxu0 0.0
        %980 = vmatpush1.msra.mxu0 0.0
        %981 = vmatprep.subr.mxu0 0.0
        %982 = vmatpush1.msra.mxu0 0.0
        %983 = vmatprep.subr.mxu0 0.0
        %984 = vmatpush1.msra.mxu0 0.0
        %985 = vmatprep.subr.mxu0 0.0
        %986 = vmatpush1.msra.mxu0 0.0
        %987 = vmatprep.subr.mxu0 0.0
        %988 = vmatpush1.msra.mxu0 0.0
        %989 = vmatprep.subr.mxu0 0.0
        %990 = vmatpush1.msra.mxu0 0.0
        %991 = vmatprep.subr.mxu0 0.0
        %992 = vmatpush1.msra.mxu0 0.0
        %993 = vmatprep.subr.mxu0 0.0
        %994 = vmatpush1.msra.mxu0 0.0
        %995 = vmatprep.subr.mxu0 0.0
        %996 = vmatpush1.msra.mxu0 0.0
        %997 = vmatprep.subr.mxu0 0.0
        %998 = vmatpush1.msra.mxu0 0.0
        %999 = vmatprep.subr.mxu0 0.0
        %1000 = vmatpush1.msra.mxu0 0.0
        %1001 = vmatprep.subr.mxu0 0.0
        %1002 = vmatpush1.msra.mxu0 0.0
        %1003 = vmatprep.subr.mxu0 0.0
        %1004 = vmatpush1.msra.mxu0 0.0
        %1005 = vmatprep.subr.mxu0 0.0
        %1006 = vmatpush1.msra.mxu0 0.0
        %1007 = vmatprep.subr.mxu0 0.0
        %1008 = vmatpush1.msra.mxu0 0.0
        %1009 = vmatprep.subr.mxu0 0.0
        %1010 = vmatpush1.msra.mxu0 0.0
        %1011 = vmatprep.subr.mxu0 0.0
        %1012 = vmatpush1.msra.mxu0 0.0
        %1013 = vmatprep.subr.mxu0 0.0
        %1014 = vmatpush1.msra.mxu0 0.0
        %1015 = vmatprep.subr.mxu0 0.0
        %1016 = vmatpush1.msra.mxu0 0.0
        %1017 = vmatprep.subr.mxu0 0.0
        %1018 = vmatpush1.msra.mxu0 0.0
        %1019 = vmatprep.mubr.f32.mxu0 0.0
        %1020 = vmatmul.mubr.f32.gmra.mrb[0].mxu0 %v876
        %v1021 = vpop.f32.mrb[0].mxu0
        %v1022 = vadd.f32 0.0, %v1021
        %v1023 = vpop.f32.mrb[0].mxu0
        %1024 = vdwg.mxu0
        %v1025 = vadd.f32 %v852, %v951
        %v1026 = vadd.f32 %v853, %v953
        %v1027 = vadd.f32 %v854, %v1022
        %v1028 = vld [vmem:[%s168] sm:$0xff]
        %v1029 = vld [vmem:[%s168 + $0x8] sm:$0xff]
        %s1030 = scalar_lea.vmem %s1, 40
        %v1031 = vld [vmem:[%s1030] sm:$0xff]
        %v1034 = vcombine.high %v1028, %v1028
        %v1035 = vcombine.high %v1029, %v1029
        %1036 = vrot.lane.b32.xlu0 %v1028, 108
        %v1037 = vpop.permute.xlu0 %1036
        %1038 = vrot.lane.b32.xlu0 %v1034, 108
        %v1039 = vpop.permute.xlu0 %1038
        %1040 = vrot.lane.b32.xlu0 %v1029, 108
        %v1041 = vpop.permute.xlu0 %1040
        %1042 = vrot.lane.b32.xlu0 %v1035, 108
        %v1043 = vpop.permute.xlu0 %1042
        %vm1044 = vcmask 883712
        %v1045 = vsel %vm1044, %v1037, %v1039
        %v1046 = vsel %vm1044, %v1039, %v1041
        %v1047 = vsel %vm1044, %v1041, %v1043
        %v1049 = vsel %vm181, %v1031, 0
        %v1051 = vsel %vm185, %v1045, 0
        %v1053 = vsel %vm185, %v1046, 0
        %v1055 = vsel %vm185, %v1047, 0
        %1057 = vmatprep.subr.mxu0 %v1053
        %1058 = vmatpush1.msra.mxu0 %v1051
        %1059 = vmatprep.subr.mxu0 0.0
        %1060 = vmatpush1.msra.mxu0 0.0
        %1061 = vmatprep.subr.mxu0 0.0
        %1062 = vmatpush1.msra.mxu0 0.0
        %1063 = vmatprep.subr.mxu0 0.0
        %1064 = vmatpush1.msra.mxu0 0.0
        %1065 = vmatprep.subr.mxu0 0.0
        %1066 = vmatpush1.msra.mxu0 0.0
        %1067 = vmatprep.subr.mxu0 0.0
        %1068 = vmatpush1.msra.mxu0 0.0
        %1069 = vmatprep.subr.mxu0 0.0
        %1070 = vmatpush1.msra.mxu0 0.0
        %1071 = vmatprep.subr.mxu0 0.0
        %1072 = vmatpush1.msra.mxu0 0.0
        %1073 = vmatprep.subr.mxu0 0.0
        %1074 = vmatpush1.msra.mxu0 0.0
        %1075 = vmatprep.subr.mxu0 0.0
        %1076 = vmatpush1.msra.mxu0 0.0
        %1077 = vmatprep.subr.mxu0 0.0
        %1078 = vmatpush1.msra.mxu0 0.0
        %1079 = vmatprep.subr.mxu0 0.0
        %1080 = vmatpush1.msra.mxu0 0.0
        %1081 = vmatprep.subr.mxu0 0.0
        %1082 = vmatpush1.msra.mxu0 0.0
        %1083 = vmatprep.subr.mxu0 0.0
        %1084 = vmatpush1.msra.mxu0 0.0
        %1085 = vmatprep.subr.mxu0 0.0
        %1086 = vmatpush1.msra.mxu0 0.0
        %1087 = vmatprep.subr.mxu0 0.0
        %1088 = vmatpush1.msra.mxu0 0.0
        %1089 = vmatprep.subr.mxu0 0.0
        %1090 = vmatpush1.msra.mxu0 0.0
        %1091 = vmatprep.subr.mxu0 0.0
        %1092 = vmatpush1.msra.mxu0 0.0
        %1093 = vmatprep.subr.mxu0 0.0
        %1094 = vmatpush1.msra.mxu0 0.0
        %1095 = vmatprep.subr.mxu0 0.0
        %1096 = vmatpush1.msra.mxu0 0.0
        %1097 = vmatprep.subr.mxu0 0.0
        %1098 = vmatpush1.msra.mxu0 0.0
        %1099 = vmatprep.subr.mxu0 0.0
        %1100 = vmatpush1.msra.mxu0 0.0
        %1101 = vmatprep.subr.mxu0 0.0
        %1102 = vmatpush1.msra.mxu0 0.0
        %1103 = vmatprep.subr.mxu0 0.0
        %1104 = vmatpush1.msra.mxu0 0.0
        %1105 = vmatprep.subr.mxu0 0.0
        %1106 = vmatpush1.msra.mxu0 0.0
        %1107 = vmatprep.subr.mxu0 0.0
        %1108 = vmatpush1.msra.mxu0 0.0
        %1109 = vmatprep.subr.mxu0 0.0
        %1110 = vmatpush1.msra.mxu0 0.0
        %1111 = vmatprep.subr.mxu0 0.0
        %1112 = vmatpush1.msra.mxu0 0.0
        %1113 = vmatprep.subr.mxu0 0.0
        %1114 = vmatpush1.msra.mxu0 0.0
        %1115 = vmatprep.subr.mxu0 0.0
        %1116 = vmatpush1.msra.mxu0 0.0
        %1117 = vmatprep.subr.mxu0 0.0
        %1118 = vmatpush1.msra.mxu0 0.0
        %1119 = vmatprep.subr.mxu0 0.0
        %1120 = vmatpush1.msra.mxu0 0.0
        %1121 = vmatprep.mubr.f32.mxu0 0.0
        %1122 = vmatmul.mubr.f32.gmra.mrb[0].mxu0 %v1049
        %v1123 = vpop.f32.mrb[0].mxu0
        %v1124 = vadd.f32 0.0, %v1123
        %v1125 = vpop.f32.mrb[0].mxu0
        %v1126 = vadd.f32 0.0, %v1125
        %1127 = vdwg.mxu0
        %1128 = vmatprep.subr.mxu0 0.0
        %1129 = vmatpush1.msra.mxu0 %v1055
        %1130 = vmatprep.subr.mxu0 0.0
        %1131 = vmatpush1.msra.mxu0 0.0
        %1132 = vmatprep.subr.mxu0 0.0
        %1133 = vmatpush1.msra.mxu0 0.0
        %1134 = vmatprep.subr.mxu0 0.0
        %1135 = vmatpush1.msra.mxu0 0.0
        %1136 = vmatprep.subr.mxu0 0.0
        %1137 = vmatpush1.msra.mxu0 0.0
        %1138 = vmatprep.subr.mxu0 0.0
        %1139 = vmatpush1.msra.mxu0 0.0
        %1140 = vmatprep.subr.mxu0 0.0
        %1141 = vmatpush1.msra.mxu0 0.0
        %1142 = vmatprep.subr.mxu0 0.0
        %1143 = vmatpush1.msra.mxu0 0.0
        %1144 = vmatprep.subr.mxu0 0.0
        %1145 = vmatpush1.msra.mxu0 0.0
        %1146 = vmatprep.subr.mxu0 0.0
        %1147 = vmatpush1.msra.mxu0 0.0
        %1148 = vmatprep.subr.mxu0 0.0
        %1149 = vmatpush1.msra.mxu0 0.0
        %1150 = vmatprep.subr.mxu0 0.0
        %1151 = vmatpush1.msra.mxu0 0.0
        %1152 = vmatprep.subr.mxu0 0.0
        %1153 = vmatpush1.msra.mxu0 0.0
        %1154 = vmatprep.subr.mxu0 0.0
        %1155 = vmatpush1.msra.mxu0 0.0
        %1156 = vmatprep.subr.mxu0 0.0
        %1157 = vmatpush1.msra.mxu0 0.0
        %1158 = vmatprep.subr.mxu0 0.0
        %1159 = vmatpush1.msra.mxu0 0.0
        %1160 = vmatprep.subr.mxu0 0.0
        %1161 = vmatpush1.msra.mxu0 0.0
        %1162 = vmatprep.subr.mxu0 0.0
        %1163 = vmatpush1.msra.mxu0 0.0
        %1164 = vmatprep.subr.mxu0 0.0
        %1165 = vmatpush1.msra.mxu0 0.0
        %1166 = vmatprep.subr.mxu0 0.0
        %1167 = vmatpush1.msra.mxu0 0.0
        %1168 = vmatprep.subr.mxu0 0.0
        %1169 = vmatpush1.msra.mxu0 0.0
        %1170 = vmatprep.subr.mxu0 0.0
        %1171 = vmatpush1.msra.mxu0 0.0
        %1172 = vmatprep.subr.mxu0 0.0
        %1173 = vmatpush1.msra.mxu0 0.0
        %1174 = vmatprep.subr.mxu0 0.0
        %1175 = vmatpush1.msra.mxu0 0.0
        %1176 = vmatprep.subr.mxu0 0.0
        %1177 = vmatpush1.msra.mxu0 0.0
        %1178 = vmatprep.subr.mxu0 0.0
        %1179 = vmatpush1.msra.mxu0 0.0
        %1180 = vmatprep.subr.mxu0 0.0
        %1181 = vmatpush1.msra.mxu0 0.0
        %1182 = vmatprep.subr.mxu0 0.0
        %1183 = vmatpush1.msra.mxu0 0.0
        %1184 = vmatprep.subr.mxu0 0.0
        %1185 = vmatpush1.msra.mxu0 0.0
        %1186 = vmatprep.subr.mxu0 0.0
        %1187 = vmatpush1.msra.mxu0 0.0
        %1188 = vmatprep.subr.mxu0 0.0
        %1189 = vmatpush1.msra.mxu0 0.0
        %1190 = vmatprep.subr.mxu0 0.0
        %1191 = vmatpush1.msra.mxu0 0.0
        %1192 = vmatprep.mubr.f32.mxu0 0.0
        %1193 = vmatmul.mubr.f32.gmra.mrb[0].mxu0 %v1049
        %v1194 = vpop.f32.mrb[0].mxu0
        %v1195 = vadd.f32 0.0, %v1194
        %v1196 = vpop.f32.mrb[0].mxu0
        %1197 = vdwg.mxu0
        %v1198 = vadd.f32 %v1025, %v1124
        %v1199 = vadd.f32 %v1026, %v1126
        %v1200 = vadd.f32 %v1027, %v1195
        %v1201 = vld [vmem:[%s168] sm:$0xff]
        %v1202 = vld [vmem:[%s168 + $0x8] sm:$0xff]
        %s1203 = scalar_lea.vmem %s1, 48
        %v1204 = vld [vmem:[%s1203] sm:$0xff]
        %v1207 = vcombine.high %v1201, %v1201
        %v1208 = vcombine.high %v1202, %v1202
        %1209 = vrot.lane.b32.xlu0 %v1201, 92
        %v1210 = vpop.permute.xlu0 %1209
        %1211 = vrot.lane.b32.xlu0 %v1207, 92
        %v1212 = vpop.permute.xlu0 %1211
        %1213 = vrot.lane.b32.xlu0 %v1202, 92
        %v1214 = vpop.permute.xlu0 %1213
        %1215 = vrot.lane.b32.xlu0 %v1208, 92
        %v1216 = vpop.permute.xlu0 %1215
        %vm1217 = vcmask 752640
        %v1218 = vsel %vm1217, %v1210, %v1212
        %v1219 = vsel %vm1217, %v1212, %v1214
        %v1220 = vsel %vm1217, %v1214, %v1216
        %v1222 = vsel %vm181, %v1204, 0
        %v1224 = vsel %vm185, %v1218, 0
        %v1226 = vsel %vm185, %v1219, 0
        %v1228 = vsel %vm185, %v1220, 0
        %1230 = vmatprep.subr.mxu0 %v1226
        %1231 = vmatpush1.msra.mxu0 %v1224
        %1232 = vmatprep.subr.mxu0 0.0
        %1233 = vmatpush1.msra.mxu0 0.0
        %1234 = vmatprep.subr.mxu0 0.0
        %1235 = vmatpush1.msra.mxu0 0.0
        %1236 = vmatprep.subr.mxu0 0.0
        %1237 = vmatpush1.msra.mxu0 0.0
        %1238 = vmatprep.subr.mxu0 0.0
        %1239 = vmatpush1.msra.mxu0 0.0
        %1240 = vmatprep.subr.mxu0 0.0
        %1241 = vmatpush1.msra.mxu0 0.0
        %1242 = vmatprep.subr.mxu0 0.0
        %1243 = vmatpush1.msra.mxu0 0.0
        %1244 = vmatprep.subr.mxu0 0.0
        %1245 = vmatpush1.msra.mxu0 0.0
        %1246 = vmatprep.subr.mxu0 0.0
        %1247 = vmatpush1.msra.mxu0 0.0
        %1248 = vmatprep.subr.mxu0 0.0
        %1249 = vmatpush1.msra.mxu0 0.0
        %1250 = vmatprep.subr.mxu0 0.0
        %1251 = vmatpush1.msra.mxu0 0.0
        %1252 = vmatprep.subr.mxu0 0.0
        %1253 = vmatpush1.msra.mxu0 0.0
        %1254 = vmatprep.subr.mxu0 0.0
        %1255 = vmatpush1.msra.mxu0 0.0
        %1256 = vmatprep.subr.mxu0 0.0
        %1257 = vmatpush1.msra.mxu0 0.0
        %1258 = vmatprep.subr.mxu0 0.0
        %1259 = vmatpush1.msra.mxu0 0.0
        %1260 = vmatprep.subr.mxu0 0.0
        %1261 = vmatpush1.msra.mxu0 0.0
        %1262 = vmatprep.subr.mxu0 0.0
        %1263 = vmatpush1.msra.mxu0 0.0
        %1264 = vmatprep.subr.mxu0 0.0
        %1265 = vmatpush1.msra.mxu0 0.0
        %1266 = vmatprep.subr.mxu0 0.0
        %1267 = vmatpush1.msra.mxu0 0.0
        %1268 = vmatprep.subr.mxu0 0.0
        %1269 = vmatpush1.msra.mxu0 0.0
        %1270 = vmatprep.subr.mxu0 0.0
        %1271 = vmatpush1.msra.mxu0 0.0
        %1272 = vmatprep.subr.mxu0 0.0
        %1273 = vmatpush1.msra.mxu0 0.0
        %1274 = vmatprep.subr.mxu0 0.0
        %1275 = vmatpush1.msra.mxu0 0.0
        %1276 = vmatprep.subr.mxu0 0.0
        %1277 = vmatpush1.msra.mxu0 0.0
        %1278 = vmatprep.subr.mxu0 0.0
        %1279 = vmatpush1.msra.mxu0 0.0
        %1280 = vmatprep.subr.mxu0 0.0
        %1281 = vmatpush1.msra.mxu0 0.0
        %1282 = vmatprep.subr.mxu0 0.0
        %1283 = vmatpush1.msra.mxu0 0.0
        %1284 = vmatprep.subr.mxu0 0.0
        %1285 = vmatpush1.msra.mxu0 0.0
        %1286 = vmatprep.subr.mxu0 0.0
        %1287 = vmatpush1.msra.mxu0 0.0
        %1288 = vmatprep.subr.mxu0 0.0
        %1289 = vmatpush1.msra.mxu0 0.0
        %1290 = vmatprep.subr.mxu0 0.0
        %1291 = vmatpush1.msra.mxu0 0.0
        %1292 = vmatprep.subr.mxu0 0.0
        %1293 = vmatpush1.msra.mxu0 0.0
        %1294 = vmatprep.mubr.f32.mxu0 0.0
        %1295 = vmatmul.mubr.f32.gmra.mrb[0].mxu0 %v1222
        %v1296 = vpop.f32.mrb[0].mxu0
        %v1297 = vadd.f32 0.0, %v1296
        %v1298 = vpop.f32.mrb[0].mxu0
        %v1299 = vadd.f32 0.0, %v1298
        %1300 = vdwg.mxu0
        %1301 = vmatprep.subr.mxu0 0.0
        %1302 = vmatpush1.msra.mxu0 %v1228
        %1303 = vmatprep.subr.mxu0 0.0
        %1304 = vmatpush1.msra.mxu0 0.0
        %1305 = vmatprep.subr.mxu0 0.0
        %1306 = vmatpush1.msra.mxu0 0.0
        %1307 = vmatprep.subr.mxu0 0.0
        %1308 = vmatpush1.msra.mxu0 0.0
        %1309 = vmatprep.subr.mxu0 0.0
        %1310 = vmatpush1.msra.mxu0 0.0
        %1311 = vmatprep.subr.mxu0 0.0
        %1312 = vmatpush1.msra.mxu0 0.0
        %1313 = vmatprep.subr.mxu0 0.0
        %1314 = vmatpush1.msra.mxu0 0.0
        %1315 = vmatprep.subr.mxu0 0.0
        %1316 = vmatpush1.msra.mxu0 0.0
        %1317 = vmatprep.subr.mxu0 0.0
        %1318 = vmatpush1.msra.mxu0 0.0
        %1319 = vmatprep.subr.mxu0 0.0
        %1320 = vmatpush1.msra.mxu0 0.0
        %1321 = vmatprep.subr.mxu0 0.0
        %1322 = vmatpush1.msra.mxu0 0.0
        %1323 = vmatprep.subr.mxu0 0.0
        %1324 = vmatpush1.msra.mxu0 0.0
        %1325 = vmatprep.subr.mxu0 0.0
        %1326 = vmatpush1.msra.mxu0 0.0
        %1327 = vmatprep.subr.mxu0 0.0
        %1328 = vmatpush1.msra.mxu0 0.0
        %1329 = vmatprep.subr.mxu0 0.0
        %1330 = vmatpush1.msra.mxu0 0.0
        %1331 = vmatprep.subr.mxu0 0.0
        %1332 = vmatpush1.msra.mxu0 0.0
        %1333 = vmatprep.subr.mxu0 0.0
        %1334 = vmatpush1.msra.mxu0 0.0
        %1335 = vmatprep.subr.mxu0 0.0
        %1336 = vmatpush1.msra.mxu0 0.0
        %1337 = vmatprep.subr.mxu0 0.0
        %1338 = vmatpush1.msra.mxu0 0.0
        %1339 = vmatprep.subr.mxu0 0.0
        %1340 = vmatpush1.msra.mxu0 0.0
        %1341 = vmatprep.subr.mxu0 0.0
        %1342 = vmatpush1.msra.mxu0 0.0
        %1343 = vmatprep.subr.mxu0 0.0
        %1344 = vmatpush1.msra.mxu0 0.0
        %1345 = vmatprep.subr.mxu0 0.0
        %1346 = vmatpush1.msra.mxu0 0.0
        %1347 = vmatprep.subr.mxu0 0.0
        %1348 = vmatpush1.msra.mxu0 0.0
        %1349 = vmatprep.subr.mxu0 0.0
        %1350 = vmatpush1.msra.mxu0 0.0
        %1351 = vmatprep.subr.mxu0 0.0
        %1352 = vmatpush1.msra.mxu0 0.0
        %1353 = vmatprep.subr.mxu0 0.0
        %1354 = vmatpush1.msra.mxu0 0.0
        %1355 = vmatprep.subr.mxu0 0.0
        %1356 = vmatpush1.msra.mxu0 0.0
        %1357 = vmatprep.subr.mxu0 0.0
        %1358 = vmatpush1.msra.mxu0 0.0
        %1359 = vmatprep.subr.mxu0 0.0
        %1360 = vmatpush1.msra.mxu0 0.0
        %1361 = vmatprep.subr.mxu0 0.0
        %1362 = vmatpush1.msra.mxu0 0.0
        %1363 = vmatprep.subr.mxu0 0.0
        %1364 = vmatpush1.msra.mxu0 0.0
        %1365 = vmatprep.mubr.f32.mxu0 0.0
        %1366 = vmatmul.mubr.f32.gmra.mrb[0].mxu0 %v1222
        %v1367 = vpop.f32.mrb[0].mxu0
        %v1368 = vadd.f32 0.0, %v1367
        %v1369 = vpop.f32.mrb[0].mxu0
        %1370 = vdwg.mxu0
        %v1371 = vadd.f32 %v1198, %v1297
        %v1372 = vadd.f32 %v1199, %v1299
        %v1373 = vadd.f32 %v1200, %v1368
        %v1374 = vld [vmem:[%s168] sm:$0xff]
        %v1375 = vld [vmem:[%s168 + $0x8] sm:$0xff]
        %s1376 = scalar_lea.vmem %s1, 56
        %v1377 = vld [vmem:[%s1376] sm:$0xff]
        %v1380 = vcombine.high %v1374, %v1374
        %v1381 = vcombine.high %v1375, %v1375
        %1382 = vrot.lane.b32.xlu0 %v1374, 91
        %v1383 = vpop.permute.xlu0 %1382
        %1384 = vrot.lane.b32.xlu0 %v1380, 91
        %v1385 = vpop.permute.xlu0 %1384
        %1386 = vrot.lane.b32.xlu0 %v1375, 91
        %v1387 = vpop.permute.xlu0 %1386
        %1388 = vrot.lane.b32.xlu0 %v1381, 91
        %v1389 = vpop.permute.xlu0 %1388
        %vm1390 = vcmask 744448
        %v1391 = vsel %vm1390, %v1383, %v1385
        %v1392 = vsel %vm1390, %v1385, %v1387
        %v1393 = vsel %vm1390, %v1387, %v1389
        %v1395 = vsel %vm181, %v1377, 0
        %v1397 = vsel %vm185, %v1391, 0
        %v1399 = vsel %vm185, %v1392, 0
        %v1401 = vsel %vm185, %v1393, 0
        %1403 = vmatprep.subr.mxu0 %v1399
        %1404 = vmatpush1.msra.mxu0 %v1397
        %1405 = vmatprep.subr.mxu0 0.0
        %1406 = vmatpush1.msra.mxu0 0.0
        %1407 = vmatprep.subr.mxu0 0.0
        %1408 = vmatpush1.msra.mxu0 0.0
        %1409 = vmatprep.subr.mxu0 0.0
        %1410 = vmatpush1.msra.mxu0 0.0
        %1411 = vmatprep.subr.mxu0 0.0
        %1412 = vmatpush1.msra.mxu0 0.0
        %1413 = vmatprep.subr.mxu0 0.0
        %1414 = vmatpush1.msra.mxu0 0.0
        %1415 = vmatprep.subr.mxu0 0.0
        %1416 = vmatpush1.msra.mxu0 0.0
        %1417 = vmatprep.subr.mxu0 0.0
        %1418 = vmatpush1.msra.mxu0 0.0
        %1419 = vmatprep.subr.mxu0 0.0
        %1420 = vmatpush1.msra.mxu0 0.0
        %1421 = vmatprep.subr.mxu0 0.0
        %1422 = vmatpush1.msra.mxu0 0.0
        %1423 = vmatprep.subr.mxu0 0.0
        %1424 = vmatpush1.msra.mxu0 0.0
        %1425 = vmatprep.subr.mxu0 0.0
        %1426 = vmatpush1.msra.mxu0 0.0
        %1427 = vmatprep.subr.mxu0 0.0
        %1428 = vmatpush1.msra.mxu0 0.0
        %1429 = vmatprep.subr.mxu0 0.0
        %1430 = vmatpush1.msra.mxu0 0.0
        %1431 = vmatprep.subr.mxu0 0.0
        %1432 = vmatpush1.msra.mxu0 0.0
        %1433 = vmatprep.subr.mxu0 0.0
        %1434 = vmatpush1.msra.mxu0 0.0
        %1435 = vmatprep.subr.mxu0 0.0
        %1436 = vmatpush1.msra.mxu0 0.0
        %1437 = vmatprep.subr.mxu0 0.0
        %1438 = vmatpush1.msra.mxu0 0.0
        %1439 = vmatprep.subr.mxu0 0.0
        %1440 = vmatpush1.msra.mxu0 0.0
        %1441 = vmatprep.subr.mxu0 0.0
        %1442 = vmatpush1.msra.mxu0 0.0
        %1443 = vmatprep.subr.mxu0 0.0
        %1444 = vmatpush1.msra.mxu0 0.0
        %1445 = vmatprep.subr.mxu0 0.0
        %1446 = vmatpush1.msra.mxu0 0.0
        %1447 = vmatprep.subr.mxu0 0.0
        %1448 = vmatpush1.msra.mxu0 0.0
        %1449 = vmatprep.subr.mxu0 0.0
        %1450 = vmatpush1.msra.mxu0 0.0
        %1451 = vmatprep.subr.mxu0 0.0
        %1452 = vmatpush1.msra.mxu0 0.0
        %1453 = vmatprep.subr.mxu0 0.0
        %1454 = vmatpush1.msra.mxu0 0.0
        %1455 = vmatprep.subr.mxu0 0.0
        %1456 = vmatpush1.msra.mxu0 0.0
        %1457 = vmatprep.subr.mxu0 0.0
        %1458 = vmatpush1.msra.mxu0 0.0
        %1459 = vmatprep.subr.mxu0 0.0
        %1460 = vmatpush1.msra.mxu0 0.0
        %1461 = vmatprep.subr.mxu0 0.0
        %1462 = vmatpush1.msra.mxu0 0.0
        %1463 = vmatprep.subr.mxu0 0.0
        %1464 = vmatpush1.msra.mxu0 0.0
        %1465 = vmatprep.subr.mxu0 0.0
        %1466 = vmatpush1.msra.mxu0 0.0
        %1467 = vmatprep.mubr.f32.mxu0 0.0
        %1468 = vmatmul.mubr.f32.gmra.mrb[0].mxu0 %v1395
        %v1469 = vpop.f32.mrb[0].mxu0
        %v1470 = vadd.f32 0.0, %v1469
        %v1471 = vpop.f32.mrb[0].mxu0
        %v1472 = vadd.f32 0.0, %v1471
        %1473 = vdwg.mxu0
        %1474 = vmatprep.subr.mxu0 0.0
        %1475 = vmatpush1.msra.mxu0 %v1401
        %1476 = vmatprep.subr.mxu0 0.0
        %1477 = vmatpush1.msra.mxu0 0.0
        %1478 = vmatprep.subr.mxu0 0.0
        %1479 = vmatpush1.msra.mxu0 0.0
        %1480 = vmatprep.subr.mxu0 0.0
        %1481 = vmatpush1.msra.mxu0 0.0
        %1482 = vmatprep.subr.mxu0 0.0
        %1483 = vmatpush1.msra.mxu0 0.0
        %1484 = vmatprep.subr.mxu0 0.0
        %1485 = vmatpush1.msra.mxu0 0.0
        %1486 = vmatprep.subr.mxu0 0.0
        %1487 = vmatpush1.msra.mxu0 0.0
        %1488 = vmatprep.subr.mxu0 0.0
        %1489 = vmatpush1.msra.mxu0 0.0
        %1490 = vmatprep.subr.mxu0 0.0
        %1491 = vmatpush1.msra.mxu0 0.0
        %1492 = vmatprep.subr.mxu0 0.0
        %1493 = vmatpush1.msra.mxu0 0.0
        %1494 = vmatprep.subr.mxu0 0.0
        %1495 = vmatpush1.msra.mxu0 0.0
        %1496 = vmatprep.subr.mxu0 0.0
        %1497 = vmatpush1.msra.mxu0 0.0
        %1498 = vmatprep.subr.mxu0 0.0
        %1499 = vmatpush1.msra.mxu0 0.0
        %1500 = vmatprep.subr.mxu0 0.0
        %1501 = vmatpush1.msra.mxu0 0.0
        %1502 = vmatprep.subr.mxu0 0.0
        %1503 = vmatpush1.msra.mxu0 0.0
        %1504 = vmatprep.subr.mxu0 0.0
        %1505 = vmatpush1.msra.mxu0 0.0
        %1506 = vmatprep.subr.mxu0 0.0
        %1507 = vmatpush1.msra.mxu0 0.0
        %1508 = vmatprep.subr.mxu0 0.0
        %1509 = vmatpush1.msra.mxu0 0.0
        %1510 = vmatprep.subr.mxu0 0.0
        %1511 = vmatpush1.msra.mxu0 0.0
        %1512 = vmatprep.subr.mxu0 0.0
        %1513 = vmatpush1.msra.mxu0 0.0
        %1514 = vmatprep.subr.mxu0 0.0
        %1515 = vmatpush1.msra.mxu0 0.0
        %1516 = vmatprep.subr.mxu0 0.0
        %1517 = vmatpush1.msra.mxu0 0.0
        %1518 = vmatprep.subr.mxu0 0.0
        %1519 = vmatpush1.msra.mxu0 0.0
        %1520 = vmatprep.subr.mxu0 0.0
        %1521 = vmatpush1.msra.mxu0 0.0
        %1522 = vmatprep.subr.mxu0 0.0
        %1523 = vmatpush1.msra.mxu0 0.0
        %1524 = vmatprep.subr.mxu0 0.0
        %1525 = vmatpush1.msra.mxu0 0.0
        %1526 = vmatprep.subr.mxu0 0.0
        %1527 = vmatpush1.msra.mxu0 0.0
        %1528 = vmatprep.subr.mxu0 0.0
        %1529 = vmatpush1.msra.mxu0 0.0
        %1530 = vmatprep.subr.mxu0 0.0
        %1531 = vmatpush1.msra.mxu0 0.0
        %1532 = vmatprep.subr.mxu0 0.0
        %1533 = vmatpush1.msra.mxu0 0.0
        %1534 = vmatprep.subr.mxu0 0.0
        %1535 = vmatpush1.msra.mxu0 0.0
        %1536 = vmatprep.subr.mxu0 0.0
        %1537 = vmatpush1.msra.mxu0 0.0
        %1538 = vmatprep.mubr.f32.mxu0 0.0
        %1539 = vmatmul.mubr.f32.gmra.mrb[0].mxu0 %v1395
        %v1540 = vpop.f32.mrb[0].mxu0
        %v1541 = vadd.f32 0.0, %v1540
        %v1542 = vpop.f32.mrb[0].mxu0
        %1543 = vdwg.mxu0
        %v1544 = vadd.f32 %v1371, %v1470
        %v1545 = vadd.f32 %v1372, %v1472
        %v1546 = vadd.f32 %v1373, %v1541
        %v1547 = vld [vmem:[%s168] sm:$0xff]
        %v1548 = vld [vmem:[%s168 + $0x8] sm:$0xff]
        %s1549 = scalar_lea.vmem %s1, 64
        %v1550 = vld [vmem:[%s1549] sm:$0xff]
        %v1553 = vcombine.high %v1547, %v1547
        %v1554 = vcombine.high %v1548, %v1548
        %1555 = vrot.lane.b32.xlu0 %v1547, 90
        %v1556 = vpop.permute.xlu0 %1555
        %1557 = vrot.lane.b32.xlu0 %v1553, 90
        %v1558 = vpop.permute.xlu0 %1557
        %1559 = vrot.lane.b32.xlu0 %v1548, 90
        %v1560 = vpop.permute.xlu0 %1559
        %1561 = vrot.lane.b32.xlu0 %v1554, 90
        %v1562 = vpop.permute.xlu0 %1561
        %vm1563 = vcmask 736256
        %v1564 = vsel %vm1563, %v1556, %v1558
        %v1565 = vsel %vm1563, %v1558, %v1560
        %v1566 = vsel %vm1563, %v1560, %v1562
        %v1568 = vsel %vm181, %v1550, 0
        %v1570 = vsel %vm185, %v1564, 0
        %v1572 = vsel %vm185, %v1565, 0
        %v1574 = vsel %vm185, %v1566, 0
        %1576 = vmatprep.subr.mxu0 %v1572
        %1577 = vmatpush1.msra.mxu0 %v1570
        %1578 = vmatprep.subr.mxu0 0.0
        %1579 = vmatpush1.msra.mxu0 0.0
        %1580 = vmatprep.subr.mxu0 0.0
        %1581 = vmatpush1.msra.mxu0 0.0
        %1582 = vmatprep.subr.mxu0 0.0
        %1583 = vmatpush1.msra.mxu0 0.0
        %1584 = vmatprep.subr.mxu0 0.0
        %1585 = vmatpush1.msra.mxu0 0.0
        %1586 = vmatprep.subr.mxu0 0.0
        %1587 = vmatpush1.msra.mxu0 0.0
        %1588 = vmatprep.subr.mxu0 0.0
        %1589 = vmatpush1.msra.mxu0 0.0
        %1590 = vmatprep.subr.mxu0 0.0
        %1591 = vmatpush1.msra.mxu0 0.0
        %1592 = vmatprep.subr.mxu0 0.0
        %1593 = vmatpush1.msra.mxu0 0.0
        %1594 = vmatprep.subr.mxu0 0.0
        %1595 = vmatpush1.msra.mxu0 0.0
        %1596 = vmatprep.subr.mxu0 0.0
        %1597 = vmatpush1.msra.mxu0 0.0
        %1598 = vmatprep.subr.mxu0 0.0
        %1599 = vmatpush1.msra.mxu0 0.0
        %1600 = vmatprep.subr.mxu0 0.0
        %1601 = vmatpush1.msra.mxu0 0.0
        %1602 = vmatprep.subr.mxu0 0.0
        %1603 = vmatpush1.msra.mxu0 0.0
        %1604 = vmatprep.subr.mxu0 0.0
        %1605 = vmatpush1.msra.mxu0 0.0
        %1606 = vmatprep.subr.mxu0 0.0
        %1607 = vmatpush1.msra.mxu0 0.0
        %1608 = vmatprep.subr.mxu0 0.0
        %1609 = vmatpush1.msra.mxu0 0.0
        %1610 = vmatprep.subr.mxu0 0.0
        %1611 = vmatpush1.msra.mxu0 0.0
        %1612 = vmatprep.subr.mxu0 0.0
        %1613 = vmatpush1.msra.mxu0 0.0
        %1614 = vmatprep.subr.mxu0 0.0
        %1615 = vmatpush1.msra.mxu0 0.0
        %1616 = vmatprep.subr.mxu0 0.0
        %1617 = vmatpush1.msra.mxu0 0.0
        %1618 = vmatprep.subr.mxu0 0.0
        %1619 = vmatpush1.msra.mxu0 0.0
        %1620 = vmatprep.subr.mxu0 0.0
        %1621 = vmatpush1.msra.mxu0 0.0
        %1622 = vmatprep.subr.mxu0 0.0
        %1623 = vmatpush1.msra.mxu0 0.0
        %1624 = vmatprep.subr.mxu0 0.0
        %1625 = vmatpush1.msra.mxu0 0.0
        %1626 = vmatprep.subr.mxu0 0.0
        %1627 = vmatpush1.msra.mxu0 0.0
        %1628 = vmatprep.subr.mxu0 0.0
        %1629 = vmatpush1.msra.mxu0 0.0
        %1630 = vmatprep.subr.mxu0 0.0
        %1631 = vmatpush1.msra.mxu0 0.0
        %1632 = vmatprep.subr.mxu0 0.0
        %1633 = vmatpush1.msra.mxu0 0.0
        %1634 = vmatprep.subr.mxu0 0.0
        %1635 = vmatpush1.msra.mxu0 0.0
        %1636 = vmatprep.subr.mxu0 0.0
        %1637 = vmatpush1.msra.mxu0 0.0
        %1638 = vmatprep.subr.mxu0 0.0
        %1639 = vmatpush1.msra.mxu0 0.0
        %1640 = vmatprep.mubr.f32.mxu0 0.0
        %1641 = vmatmul.mubr.f32.gmra.mrb[0].mxu0 %v1568
        %v1642 = vpop.f32.mrb[0].mxu0
        %v1643 = vadd.f32 0.0, %v1642
        %v1644 = vpop.f32.mrb[0].mxu0
        %v1645 = vadd.f32 0.0, %v1644
        %1646 = vdwg.mxu0
        %1647 = vmatprep.subr.mxu0 0.0
        %1648 = vmatpush1.msra.mxu0 %v1574
        %1649 = vmatprep.subr.mxu0 0.0
        %1650 = vmatpush1.msra.mxu0 0.0
        %1651 = vmatprep.subr.mxu0 0.0
        %1652 = vmatpush1.msra.mxu0 0.0
        %1653 = vmatprep.subr.mxu0 0.0
        %1654 = vmatpush1.msra.mxu0 0.0
        %1655 = vmatprep.subr.mxu0 0.0
        %1656 = vmatpush1.msra.mxu0 0.0
        %1657 = vmatprep.subr.mxu0 0.0
        %1658 = vmatpush1.msra.mxu0 0.0
        %1659 = vmatprep.subr.mxu0 0.0
        %1660 = vmatpush1.msra.mxu0 0.0
        %1661 = vmatprep.subr.mxu0 0.0
        %1662 = vmatpush1.msra.mxu0 0.0
        %1663 = vmatprep.subr.mxu0 0.0
        %1664 = vmatpush1.msra.mxu0 0.0
        %1665 = vmatprep.subr.mxu0 0.0
        %1666 = vmatpush1.msra.mxu0 0.0
        %1667 = vmatprep.subr.mxu0 0.0
        %1668 = vmatpush1.msra.mxu0 0.0
        %1669 = vmatprep.subr.mxu0 0.0
        %1670 = vmatpush1.msra.mxu0 0.0
        %1671 = vmatprep.subr.mxu0 0.0
        %1672 = vmatpush1.msra.mxu0 0.0
        %1673 = vmatprep.subr.mxu0 0.0
        %1674 = vmatpush1.msra.mxu0 0.0
        %1675 = vmatprep.subr.mxu0 0.0
        %1676 = vmatpush1.msra.mxu0 0.0
        %1677 = vmatprep.subr.mxu0 0.0
        %1678 = vmatpush1.msra.mxu0 0.0
        %1679 = vmatprep.subr.mxu0 0.0
        %1680 = vmatpush1.msra.mxu0 0.0
        %1681 = vmatprep.subr.mxu0 0.0
        %1682 = vmatpush1.msra.mxu0 0.0
        %1683 = vmatprep.subr.mxu0 0.0
        %1684 = vmatpush1.msra.mxu0 0.0
        %1685 = vmatprep.subr.mxu0 0.0
        %1686 = vmatpush1.msra.mxu0 0.0
        %1687 = vmatprep.subr.mxu0 0.0
        %1688 = vmatpush1.msra.mxu0 0.0
        %1689 = vmatprep.subr.mxu0 0.0
        %1690 = vmatpush1.msra.mxu0 0.0
        %1691 = vmatprep.subr.mxu0 0.0
        %1692 = vmatpush1.msra.mxu0 0.0
        %1693 = vmatprep.subr.mxu0 0.0
        %1694 = vmatpush1.msra.mxu0 0.0
        %1695 = vmatprep.subr.mxu0 0.0
        %1696 = vmatpush1.msra.mxu0 0.0
        %1697 = vmatprep.subr.mxu0 0.0
        %1698 = vmatpush1.msra.mxu0 0.0
        %1699 = vmatprep.subr.mxu0 0.0
        %1700 = vmatpush1.msra.mxu0 0.0
        %1701 = vmatprep.subr.mxu0 0.0
        %1702 = vmatpush1.msra.mxu0 0.0
        %1703 = vmatprep.subr.mxu0 0.0
        %1704 = vmatpush1.msra.mxu0 0.0
        %1705 = vmatprep.subr.mxu0 0.0
        %1706 = vmatpush1.msra.mxu0 0.0
        %1707 = vmatprep.subr.mxu0 0.0
        %1708 = vmatpush1.msra.mxu0 0.0
        %1709 = vmatprep.subr.mxu0 0.0
        %1710 = vmatpush1.msra.mxu0 0.0
        %1711 = vmatprep.mubr.f32.mxu0 0.0
        %1712 = vmatmul.mubr.f32.gmra.mrb[0].mxu0 %v1568
        %v1713 = vpop.f32.mrb[0].mxu0
        %v1714 = vadd.f32 0.0, %v1713
        %v1715 = vpop.f32.mrb[0].mxu0
        %1716 = vdwg.mxu0
        %v1717 = vadd.f32 %v1544, %v1643
        %v1718 = vadd.f32 %v1545, %v1645
        %v1719 = vadd.f32 %v1546, %v1714
        %1720 = vst [vmem:[%s163] sm:$0xff] %v1717
        %1721 = vst [vmem:[%s163 + $0x8] sm:$0xff] %v1718
        %1722 = vst [vmem:[%s163 + $0x10] sm:$0xff] %v1719
        %s1723 = sand.u32 %s93, 1
        %s1724 = scalar_lea.sflag [#allocation3], %s1723
        %s1725 = sand.u32 %s93, 1
        %s1726 = smul.addr %s1725, 24
        %s1727 = scalar_lea.vmem [#allocation2], %s1726
        // Predicated region
        $region33: #{tpu_custom_call.1} parent=31 // pred_check
          %p1728 = pneg %p103
        $region34: #{tpu_custom_call.1} parent=31 // pred_check_branch
          %1730 = sbr.rel (%p1728) target = $region36
        $region35: #{tpu_custom_call.1} parent=31 // pred_region
          %s1732 = ssub.s32 384, 384
          %1733 = vsyncadd %s1724, %s1732
          %s1734 = smul.addr %s17, 3
          %s1735 = smul.addr %s1734, 128
          %s1736 = scalar_lea.hbm %s3, %s1735
          %s1738 = sshll.u32 %s1727, 4
          %s1739 = int_to_ptr.vmem [resolvable:$true] %s1738
          %1741 = dma.vmem_to_hbm [thread:$0]  %s1739, 384, %s1736, %s1724
        $region36: #{tpu_custom_call.1} parent=31 // pred_fallthru
          _
      $region32: #{tpu_custom_call.1} parent=5 // pred_fallthru
        _
      %p1742 = scmp.le.s32.totalorder 2, %s12
      // Predicated region
      $region37: #{tpu_custom_call.1} parent=5 // pred_check
        %p1743 = pneg %p1742
      $region38: #{tpu_custom_call.1} parent=5 // pred_check_branch
        %1745 = sbr.rel (%p1743) target = $region40
      $region39: #{tpu_custom_call.1} parent=5 // pred_region
        %s1746 = ssub.s32 %s12, 2
        // Predicated region
        $region41: #{tpu_custom_call.1} parent=39 // pred_check
          %p1747 = pneg %p109
        $region42: #{tpu_custom_call.1} parent=39 // pred_check_branch
          %1749 = sbr.rel (%p1747) target = $region44
        $region43: #{tpu_custom_call.1} parent=39 // pred_region
          %s1750 = sand.u32 %s94, 1
          %s1751 = scalar_lea.sflag [#allocation3], %s1750
          %s1752 = sand.u32 %s94, 1
          %s1753 = smul.addr %s1752, 24
          %s1754 = scalar_lea.vmem [#allocation2], %s1753
          %1755 = dma.done %s1751, 384
        $region44: #{tpu_custom_call.1} parent=39 // pred_fallthru
          _
      $region40: #{tpu_custom_call.1} parent=5 // pred_fallthru
        _
    $region6: #{tpu_custom_call.1} parent=1 // loop_footer
      %s16 = sadd.s32 1, %s12
    $region7: #{tpu_custom_call.1} parent=1 // loop_footer_branch
      %11 = sbr.rel target = $region3
    $region8: #{tpu_custom_call.1} parent=1 // loop_exit
      _
    %1756 = vsyncpa [#allocation3], 1
    %s1757 = scalar_lea.sflag [#allocation3], 1
    %1758 = vsyncpa %s1757, 1

</llo_original>
